<compile_context>
chip_gen: v7x
topology: tpu7x:2x2x1
jax: 0.10.0
libtpu: 0.0.40
codegen_flags: <defaults>
</compile_context>

<pallas_src>
import functools

import jax
import jax.numpy as jnp
import numpy as np
from jax import lax
from jax.experimental import pallas as pl
from jax.experimental.pallas import tpu as pltpu

NEG_SLOPE = 0.01  # nn.LeakyReLU() default


def _leaky(x):
    return jnp.where(x >= 0, x, NEG_SLOPE * x)


# ---------------------------------------------------------------------------
# Tile-size / VMEM helpers
# ---------------------------------------------------------------------------
def _pick_lane_tile(total, align=128, cap=4096):
    """Largest multiple-of-`align` divisor of `total` that is <= cap and leaves
    >= 2 tiles; falls back to the full extent (always a legal block dim)."""
    if total % align != 0:
        return total
    best = None
    d = align
    while d * 2 <= total and d <= cap:
        if total % d == 0:
            best = d
        d += align
    return best if best is not None else total


def _pick_strip_rows(h2, w2, cap_lanes=4096):
    """Rows per strip R with h2 % R == 0 and (R*w2) % 128 == 0 (unmasked lane-dense
    output stores), preferring the largest strip <= cap_lanes; falls back to a
    single full-image strip."""
    best = None
    for r in range(1, h2):
        if h2 % r == 0 and (r * w2) % 128 == 0 and r * w2 <= cap_lanes:
            best = r
    return best if best is not None else h2


def _vmem_limit(need_bytes):
    # explicit scoped-VMEM limit with headroom (defaults are 16/32 MiB)
    return int(min(64 << 20, max(32 << 20, 2 * int(need_bytes))))


# ---------------------------------------------------------------------------
# Kernel A: ConvTranspose2d(k=2, s=2, p=0) + bias + LeakyReLU
#           (all 4 kernel taps fused into a single matmul; lane dim = H*W tile)
# ---------------------------------------------------------------------------
def up_taps_kernel(x_ref, w_ref, b_ref, o_ref):
    # x_ref: (1, Cin, T)      f32   (lane tile of the flattened H*W extent)
    # w_ref: (4*Cout, Cin)    bf16  rows ordered (ki, kj, co)
    # b_ref: (4*Cout, 1)      f32
    # o_ref: (1, 4*Cout, T)   bf16  rows ordered (ki, kj, co)
    x = x_ref[0].astype(jnp.bfloat16)
    y = jnp.dot(w_ref[...], x, preferred_element_type=jnp.float32)
    o_ref[0] = _leaky(y + b_ref[...]).astype(jnp.bfloat16)


# ---------------------------------------------------------------------------
# Kernel B: 3x3 SAME conv + bias + LeakyReLU on one halo'd row strip.
#
# The strip input is the skip-added activation, row-padded by one zero row on
# top/bottom, flattened over spatial, with a 1-element zero guard on each side:
# for strip-local output position q, conv tap (dy, dx) reads xs[:, q + dy*W2 + dx].
# Two lane masks cancel the horizontal wrap at output columns 0 and W2-1.
# The 9 taps are accumulated as 9 (Cout, Cout) @ (Cout, L) MXU matmuls (f32 acc).
# ---------------------------------------------------------------------------
def conv3x3_kernel(xs_ref, ml_ref, mr_ref, w_ref, b_ref, o_ref, *, W2):
    # xs_ref: (1, Cout, Lb)      bf16  halo'd strip, Lb = (R+2)*W2 + 2
    # ml_ref: (1, L)             bf16  0 where output col == 0,      else 1
    # mr_ref: (1, L)             bf16  0 where output col == W2 - 1, else 1
    # w_ref : (9, Cout, Cout)    bf16  w_ref[dy*3+dx, o, i]
    # b_ref : (Cout, 1)          f32
    # o_ref : (1, Cout, L)       f32   L = R*W2
    L = o_ref.shape[2]
    ml = ml_ref[...]
    mr = mr_ref[...]
    acc = None
    for dy in range(3):
        for dx in range(3):
            s = dy * W2 + dx
            t = xs_ref[0, :, s:s + L]          # (Cout, L) flat-shifted window
            if dx == 0:
                t = t * ml                     # cancel wrap at col 0
            elif dx == 2:
                t = t * mr                     # cancel wrap at col W2-1
            r = jnp.dot(w_ref[dy * 3 + dx], t, preferred_element_type=jnp.float32)
            acc = r if acc is None else acc + r
    o_ref[0] = _leaky(acc + b_ref[...])


# ---------------------------------------------------------------------------
# Wrapper
# ---------------------------------------------------------------------------
def up_forward(x1, x2, params):
    """x1: (N, Cin, H, W), x2: (N, Cout, 2H, 2W), NCHW (PyTorch layout)."""
    w_t, b_t, w_c, b_c = params
    N, Cin, H, W = x1.shape
    Cout = x2.shape[1]
    H2, W2 = 2 * H, 2 * W
    HW = H * W
    L = H2 * W2

    # Kernel-friendly weight layouts (tiny, one-time transforms).
    # ConvTranspose2d weight (Cin, Cout, 2, 2) -> (4*Cout, Cin), rows (ki, kj, co).
    w_up = jnp.transpose(w_t, (2, 3, 1, 0)).reshape(4 * Cout, Cin).astype(jnp.bfloat16)
    b_up = jnp.tile(b_t, 4).reshape(4 * Cout, 1).astype(jnp.float32)
    # Conv2d weight (Cout, Cout, 3, 3) -> (9, Cout, Cout), w9[dy*3+dx, o, i].
    w9 = jnp.transpose(w_c, (2, 3, 0, 1)).reshape(9, Cout, Cout).astype(jnp.bfloat16)
    b_cc = b_c.reshape(Cout, 1).astype(jnp.float32)

    # ---- Kernel A: fused 4-tap transposed conv + bias + LeakyReLU (bf16 out) ----
    thw = _pick_lane_tile(HW)
    T = HW // thw
    x1f = x1.reshape(N, Cin, HW)                                   # free reshape
    vmem_a = 2 * (Cin * thw * 4 + 4 * Cout * thw * 2) + 4 * Cout * Cin * 2 + 4 * Cout * 4
    zd = pl.pallas_call(
        up_taps_kernel,
        out_shape=jax.ShapeDtypeStruct((N, 4 * Cout, HW), jnp.bfloat16),
        grid=(N, T),
        in_specs=[
            pl.BlockSpec((1, Cin, thw), lambda n, t: (n, 0, t)),
            pl.BlockSpec((4 * Cout, Cin), lambda n, t: (0, 0)),
            pl.BlockSpec((4 * Cout, 1), lambda n, t: (0, 0)),
        ],
        out_specs=pl.BlockSpec((1, 4 * Cout, thw), lambda n, t: (n, 0, t)),
        compiler_params=pltpu.CompilerParams(
            dimension_semantics=("parallel", "parallel"),
            vmem_limit_bytes=_vmem_limit(vmem_a)),
        cost_estimate=pl.CostEstimate(
            flops=2 * N * 4 * Cout * Cin * HW,
            transcendentals=0,
            bytes_accessed=N * HW * (4 * Cin + 2 * 4 * Cout) + 2 * 4 * Cout * Cin),
    )(x1f, w_up, b_up)

    # ---- XLA glue (bf16, one fused copy): 2x interleave + skip add + row pad +
    #      flatten + 1-elem guards + halo'd row-strip gather -----------------------
    # zd[n, (ki*2+kj)*Cout+co, i*W+j] -> z[n, co, 2i+ki, 2j+kj]
    z = (zd.reshape(N, 2, 2, Cout, H, W)
           .transpose(0, 3, 4, 1, 5, 2)
           .reshape(N, Cout, H2, W2))
    x = z + x2.astype(jnp.bfloat16)
    xg = jnp.pad(x, ((0, 0), (0, 0), (1, 1), (0, 0))).reshape(N, Cout, (H2 + 2) * W2)
    xg = jnp.pad(xg, ((0, 0), (0, 0), (1, 1)))                     # guards -> (N, Cout, Lin)

    R = _pick_strip_rows(H2, W2)                                   # rows per strip
    S = H2 // R                                                    # strips per image
    Ls = R * W2                                                    # output lanes / strip
    Lb = (R + 2) * W2 + 2                                          # halo'd input lanes / strip
    xs = jnp.stack([xg[:, :, s * Ls: s * Ls + Lb] for s in range(S)], axis=1)
    xs = xs.reshape(N * S, Cout, Lb)                               # (N*S, Cout, Lb) bf16

    # Lane masks fixing the horizontal wrap of the flat-shift windows (bf16).
    col = np.arange(Ls, dtype=np.int32) % W2
    mask_l = jnp.asarray(col != 0, jnp.bfloat16).reshape(1, Ls)
    mask_r = jnp.asarray(col != W2 - 1, jnp.bfloat16).reshape(1, Ls)

    # ---- Kernel B: 3x3 conv + bias + LeakyReLU, per halo'd row strip -------------
    vmem_b = (2 * (Cout * Lb * 2 + Cout * Ls * 4) + 9 * Cout * Cout * 2
              + 2 * Ls * 2 + Cout * Ls * 4)
    out_flat = pl.pallas_call(
        functools.partial(conv3x3_kernel, W2=W2),
        out_shape=jax.ShapeDtypeStruct((N, Cout, L), jnp.float32),
        grid=(N, S),
        in_specs=[
            pl.BlockSpec((1, Cout, Lb), lambda n, s: (n * S + s, 0, 0)),
            pl.BlockSpec((1, Ls), lambda n, s: (0, 0)),
            pl.BlockSpec((1, Ls), lambda n, s: (0, 0)),
            pl.BlockSpec((9, Cout, Cout), lambda n, s: (0, 0, 0)),
            pl.BlockSpec((Cout, 1), lambda n, s: (0, 0)),
        ],
        out_specs=pl.BlockSpec((1, Cout, Ls), lambda n, s: (n, 0, s)),
        compiler_params=pltpu.CompilerParams(
            dimension_semantics=("parallel", "parallel"),
            vmem_limit_bytes=_vmem_limit(vmem_b)),
        cost_estimate=pl.CostEstimate(
            flops=2 * N * Cout * 9 * Cout * L,
            transcendentals=0,
            bytes_accessed=N * Cout * (2 * S * Lb + 4 * L) + 2 * 9 * Cout * Cout + 4 * Ls),
    )(xs, mask_l, mask_r, w9, b_cc)

    return out_flat.reshape(N, Cout, H2, W2)                       # free reshape


# ---------------------------------------------------------------------------
# Pure-JAX reference (f32) for correctness checking
# ---------------------------------------------------------------------------
def up_forward_ref(x1, x2, params):
    w_t, b_t, w_c, b_c = params
    N, Cin, H, W = x1.shape
    Cout = w_t.shape[1]
    # ConvTranspose2d k=2, s=2, p=0: out[n,o,2i+k,2j+l] = sum_c x[n,c,i,j]*W[c,o,k,l]
    y = jnp.einsum("ncij,cokl->noikjl", x1, w_t).reshape(N, Cout, 2 * H, 2 * W)
    y = _leaky(y + b_t[None, :, None, None])
    x = y + x2
    out = lax.conv_general_dilated(
        x, w_c, window_strides=(1, 1), padding=((1, 1), (1, 1)),
        dimension_numbers=("NCHW", "OIHW", "NCHW"))
    return _leaky(out + b_c[None, :, None, None])


if __name__ == "__main__":
    # Small shapes: batch=2, in_channels=8, out_channels=4, x1 spatial 8x8.
    N, Cin, Cout, H, W = 2, 8, 4, 8, 8

    key = jax.random.PRNGKey(0)
    k1, k2, k3, k4, k5, k6 = jax.random.split(key, 6)

    x1 = jax.random.normal(k1, (N, Cin, H, W), jnp.float32)            # NCHW
    x2 = jax.random.normal(k2, (N, Cout, 2 * H, 2 * W), jnp.float32)   # NCHW

    # Parameters in PyTorch layouts:
    #   ConvTranspose2d weight: (in_channels, out_channels, 2, 2)
    #   Conv2d          weight: (out_channels, out_channels, 3, 3)
    w_t = jax.random.normal(k3, (Cin, Cout, 2, 2), jnp.float32) * 0.1
    b_t = jax.random.normal(k4, (Cout,), jnp.float32) * 0.1
    w_c = jax.random.normal(k5, (Cout, Cout, 3, 3), jnp.float32) * 0.1
    b_c = jax.random.normal(k6, (Cout,), jnp.float32) * 0.1
    params = (w_t, b_t, w_c, b_c)

    out = jax.block_until_ready(jax.jit(up_forward)(x1, x2, params))
    ref = jax.block_until_ready(up_forward_ref(x1, x2, params))

    assert out.shape == (N, Cout, 2 * H, 2 * W), out.shape
    # bf16 activations/weights in HBM + bf16 skip add (f32 MXU accumulate) vs. the
    # f32 reference -> relaxed tolerance.
    np.testing.assert_allclose(np.asarray(out), np.asarray(ref),
                               rtol=4e-2, atol=4e-2)

    print("KERNEL_OK")
</pallas_src>

<mosaic_0001>
module attributes {stable_mosaic.version = 11 : i64} {
  func.func @up_taps_kernel(%arg0: i32, %arg1: i32, %arg2: memref<1x8x64xf32, #tpu.memory_space<vmem>>, %arg3: memref<16x8xbf16, #tpu.memory_space<vmem>>, %arg4: memref<16x1xf32, #tpu.memory_space<vmem>>, %arg5: memref<1x16x64xbf16, #tpu.memory_space<vmem>>) attributes {dimension_semantics = [#tpu.dimension_semantics<parallel>, #tpu.dimension_semantics<parallel>], iteration_bounds = array<i64: 2, 1>, scalar_prefetch = 0 : i64, scratch_operands = 0 : i64, tpu.core_type = #tpu.core_type<tc>, window_params = [{transform_indices = @transform_0, window_bounds = array<i64: 1, 8, 64>}, {pipeline_mode = #tpu.pipeline_mode<synchronous>, transform_indices = @transform_1, window_bounds = array<i64: 16, 8>}, {pipeline_mode = #tpu.pipeline_mode<synchronous>, transform_indices = @transform_2, window_bounds = array<i64: 16, 1>}, {transform_indices = @transform_3, window_bounds = array<i64: 1, 16, 64>}]} {
    %c0 = arith.constant 0 : index
    %c0_0 = arith.constant 0 : index
    %c0_1 = arith.constant 0 : index
    %0 = vector.load %arg2[%c0, %c0_0, %c0_1] : memref<1x8x64xf32, #tpu.memory_space<vmem>>, vector<1x8x64xf32>
    %1 = vector.shape_cast %0 : vector<1x8x64xf32> to vector<8x64xf32>
    %2 = arith.truncf %1 : vector<8x64xf32> to vector<8x64xbf16>
    %c0_2 = arith.constant 0 : index
    %c0_3 = arith.constant 0 : index
    %3 = vector.load %arg3[%c0_2, %c0_3] : memref<16x8xbf16, #tpu.memory_space<vmem>>, vector<16x8xbf16>
    %cst = arith.constant dense<0.000000e+00> : vector<16x64xf32>
    %4 = tpu.matmul %3, %2, %cst {dimension_numbers = #tpu.dot_dimension_numbers<[1], [0], [0], [1], [0, 0, 1, 1], [], []>} : vector<16x8xbf16>, vector<8x64xbf16>, vector<16x64xf32> -> vector<16x64xf32>
    %c0_4 = arith.constant 0 : index
    %c0_5 = arith.constant 0 : index
    %5 = vector.load %arg4[%c0_4, %c0_5] : memref<16x1xf32, #tpu.memory_space<vmem>>, vector<16x1xf32>
    %6 = vector.broadcast %5 : vector<16x1xf32> to vector<16x64xf32>
    %7 = arith.addf %4, %6 : vector<16x64xf32>
    %cst_6 = arith.constant 0.000000e+00 : f32
    %8 = vector.broadcast %cst_6 : f32 to vector<16x64xf32>
    %9 = arith.cmpf oge, %7, %8 : vector<16x64xf32>
    %cst_7 = arith.constant 0.00999999977 : f32
    %10 = vector.broadcast %cst_7 : f32 to vector<16x64xf32>
    %11 = arith.mulf %10, %7 : vector<16x64xf32>
    %12 = arith.select %9, %7, %11 : vector<16x64xi1>, vector<16x64xf32>
    %13 = arith.truncf %12 : vector<16x64xf32> to vector<16x64xbf16>
    %c0_8 = arith.constant 0 : index
    %c0_9 = arith.constant 0 : index
    %c0_10 = arith.constant 0 : index
    %14 = vector.load %arg5[%c0_8, %c0_9, %c0_10] : memref<1x16x64xbf16, #tpu.memory_space<vmem>>, vector<1x16x64xbf16>
    %15 = vector.shape_cast %14 : vector<1x16x64xbf16> to vector<16x64xbf16>
    %16 = vector.shape_cast %13 : vector<16x64xbf16> to vector<1x16x64xbf16>
    tpu.vector_store %arg5[%c0_8, %c0_9, %c0_10], %16 {strides = array<i32>} : memref<1x16x64xbf16, #tpu.memory_space<vmem>>, vector<1x16x64xbf16>,
    return
  }
  func.func @transform_0(%arg0: i32, %arg1: i32) -> (i32, i32, i32) {
    %c0_i32 = arith.constant 0 : i32
    %c0_i32_0 = arith.constant 0 : i32
    return %arg0, %c0_i32, %arg1 : i32, i32, i32
  }
  func.func @transform_1(%arg0: i32, %arg1: i32) -> (i32, i32) {
    %c0_i32 = arith.constant 0 : i32
    %c0_i32_0 = arith.constant 0 : i32
    %c0_i32_1 = arith.constant 0 : i32
    return %c0_i32, %c0_i32_0 : i32, i32
  }
  func.func @transform_2(%arg0: i32, %arg1: i32) -> (i32, i32) {
    %c0_i32 = arith.constant 0 : i32
    %c0_i32_0 = arith.constant 0 : i32
    %c0_i32_1 = arith.constant 0 : i32
    return %c0_i32, %c0_i32_0 : i32, i32
  }
  func.func @transform_3(%arg0: i32, %arg1: i32) -> (i32, i32, i32) {
    %c0_i32 = arith.constant 0 : i32
    %c0_i32_0 = arith.constant 0 : i32
    return %arg0, %c0_i32, %arg1 : i32, i32, i32
  }
}

module attributes {stable_mosaic.version = 11 : i64} {
  func.func @conv3x3_kernel(%arg0: i32, %arg1: i32, %arg2: memref<1x4x162xbf16, #tpu.memory_space<vmem>>, %arg3: memref<1x128xbf16, #tpu.memory_space<vmem>>, %arg4: memref<1x128xbf16, #tpu.memory_space<vmem>>, %arg5: memref<9x4x4xbf16, #tpu.memory_space<vmem>>, %arg6: memref<4x1xf32, #tpu.memory_space<vmem>>, %arg7: memref<1x4x128xf32, #tpu.memory_space<vmem>>) attributes {dimension_semantics = [#tpu.dimension_semantics<parallel>, #tpu.dimension_semantics<parallel>], iteration_bounds = array<i64: 2, 2>, scalar_prefetch = 0 : i64, scratch_operands = 0 : i64, tpu.core_type = #tpu.core_type<tc>, window_params = [{transform_indices = @transform_0, window_bounds = array<i64: 1, 4, 162>}, {pipeline_mode = #tpu.pipeline_mode<synchronous>, transform_indices = @transform_1, window_bounds = array<i64: 1, 128>}, {pipeline_mode = #tpu.pipeline_mode<synchronous>, transform_indices = @transform_2, window_bounds = array<i64: 1, 128>}, {pipeline_mode = #tpu.pipeline_mode<synchronous>, transform_indices = @transform_3, window_bounds = array<i64: 9, 4, 4>}, {pipeline_mode = #tpu.pipeline_mode<synchronous>, transform_indices = @transform_4, window_bounds = array<i64: 4, 1>}, {transform_indices = @transform_5, window_bounds = array<i64: 1, 4, 128>}]} {
    %c0 = arith.constant 0 : index
    %c0_0 = arith.constant 0 : index
    %0 = vector.load %arg3[%c0, %c0_0] : memref<1x128xbf16, #tpu.memory_space<vmem>>, vector<1x128xbf16>
    %c0_1 = arith.constant 0 : index
    %c0_2 = arith.constant 0 : index
    %1 = vector.load %arg4[%c0_1, %c0_2] : memref<1x128xbf16, #tpu.memory_space<vmem>>, vector<1x128xbf16>
    %c0_3 = arith.constant 0 : index
    %c0_4 = arith.constant 0 : index
    %c0_5 = arith.constant 0 : index
    %2 = vector.load %arg2[%c0_3, %c0_4, %c0_5] : memref<1x4x162xbf16, #tpu.memory_space<vmem>>, vector<1x4x128xbf16>
    %3 = vector.shape_cast %2 : vector<1x4x128xbf16> to vector<4x128xbf16>
    %4 = vector.broadcast %0 : vector<1x128xbf16> to vector<4x128xbf16>
    %5 = arith.mulf %3, %4 : vector<4x128xbf16>
    %c0_6 = arith.constant 0 : index
    %c0_7 = arith.constant 0 : index
    %c0_8 = arith.constant 0 : index
    %6 = vector.load %arg5[%c0_6, %c0_7, %c0_8] : memref<9x4x4xbf16, #tpu.memory_space<vmem>>, vector<1x4x4xbf16>
    %7 = vector.shape_cast %6 : vector<1x4x4xbf16> to vector<4x4xbf16>
    %cst = arith.constant dense<0.000000e+00> : vector<4x128xf32>
    %8 = tpu.matmul %7, %5, %cst {dimension_numbers = #tpu.dot_dimension_numbers<[1], [0], [0], [1], [0, 0, 1, 1], [], []>} : vector<4x4xbf16>, vector<4x128xbf16>, vector<4x128xf32> -> vector<4x128xf32>
    %c0_9 = arith.constant 0 : index
    %c0_10 = arith.constant 0 : index
    %c1 = arith.constant 1 : index
    %9 = vector.load %arg2[%c0_9, %c0_10, %c1] : memref<1x4x162xbf16, #tpu.memory_space<vmem>>, vector<1x4x128xbf16>
    %10 = vector.shape_cast %9 : vector<1x4x128xbf16> to vector<4x128xbf16>
    %c1_11 = arith.constant 1 : index
    %c0_12 = arith.constant 0 : index
    %c0_13 = arith.constant 0 : index
    %11 = vector.load %arg5[%c1_11, %c0_12, %c0_13] : memref<9x4x4xbf16, #tpu.memory_space<vmem>>, vector<1x4x4xbf16>
    %12 = vector.shape_cast %11 : vector<1x4x4xbf16> to vector<4x4xbf16>
    %cst_14 = arith.constant dense<0.000000e+00> : vector<4x128xf32>
    %13 = tpu.matmul %12, %10, %cst_14 {dimension_numbers = #tpu.dot_dimension_numbers<[1], [0], [0], [1], [0, 0, 1, 1], [], []>} : vector<4x4xbf16>, vector<4x128xbf16>, vector<4x128xf32> -> vector<4x128xf32>
    %14 = arith.addf %8, %13 : vector<4x128xf32>
    %c0_15 = arith.constant 0 : index
    %c0_16 = arith.constant 0 : index
    %c2 = arith.constant 2 : index
    %15 = vector.load %arg2[%c0_15, %c0_16, %c2] : memref<1x4x162xbf16, #tpu.memory_space<vmem>>, vector<1x4x128xbf16>
    %16 = vector.shape_cast %15 : vector<1x4x128xbf16> to vector<4x128xbf16>
    %17 = vector.broadcast %1 : vector<1x128xbf16> to vector<4x128xbf16>
    %18 = arith.mulf %16, %17 : vector<4x128xbf16>
    %c2_17 = arith.constant 2 : index
    %c0_18 = arith.constant 0 : index
    %c0_19 = arith.constant 0 : index
    %19 = vector.load %arg5[%c2_17, %c0_18, %c0_19] : memref<9x4x4xbf16, #tpu.memory_space<vmem>>, vector<1x4x4xbf16>
    %20 = vector.shape_cast %19 : vector<1x4x4xbf16> to vector<4x4xbf16>
    %cst_20 = arith.constant dense<0.000000e+00> : vector<4x128xf32>
    %21 = tpu.matmul %20, %18, %cst_20 {dimension_numbers = #tpu.dot_dimension_numbers<[1], [0], [0], [1], [0, 0, 1, 1], [], []>} : vector<4x4xbf16>, vector<4x128xbf16>, vector<4x128xf32> -> vector<4x128xf32>
    %22 = arith.addf %14, %21 : vector<4x128xf32>
    %c0_21 = arith.constant 0 : index
    %c0_22 = arith.constant 0 : index
    %c16 = arith.constant 16 : index
    %23 = vector.load %arg2[%c0_21, %c0_22, %c16] : memref<1x4x162xbf16, #tpu.memory_space<vmem>>, vector<1x4x128xbf16>
    %24 = vector.shape_cast %23 : vector<1x4x128xbf16> to vector<4x128xbf16>
    %25 = vector.broadcast %0 : vector<1x128xbf16> to vector<4x128xbf16>
    %26 = arith.mulf %24, %25 : vector<4x128xbf16>
    %c3 = arith.constant 3 : index
    %c0_23 = arith.constant 0 : index
    %c0_24 = arith.constant 0 : index
    %27 = vector.load %arg5[%c3, %c0_23, %c0_24] : memref<9x4x4xbf16, #tpu.memory_space<vmem>>, vector<1x4x4xbf16>
    %28 = vector.shape_cast %27 : vector<1x4x4xbf16> to vector<4x4xbf16>
    %cst_25 = arith.constant dense<0.000000e+00> : vector<4x128xf32>
    %29 = tpu.matmul %28, %26, %cst_25 {dimension_numbers = #tpu.dot_dimension_numbers<[1], [0], [0], [1], [0, 0, 1, 1], [], []>} : vector<4x4xbf16>, vector<4x128xbf16>, vector<4x128xf32> -> vector<4x128xf32>
    %30 = arith.addf %22, %29 : vector<4x128xf32>
    %c0_26 = arith.constant 0 : index
    %c0_27 = arith.constant 0 : index
    %c17 = arith.constant 17 : index
    %31 = vector.load %arg2[%c0_26, %c0_27, %c17] : memref<1x4x162xbf16, #tpu.memory_space<vmem>>, vector<1x4x128xbf16>
    %32 = vector.shape_cast %31 : vector<1x4x128xbf16> to vector<4x128xbf16>
    %c4 = arith.constant 4 : index
    %c0_28 = arith.constant 0 : index
    %c0_29 = arith.constant 0 : index
    %33 = vector.load %arg5[%c4, %c0_28, %c0_29] : memref<9x4x4xbf16, #tpu.memory_space<vmem>>, vector<1x4x4xbf16>
    %34 = vector.shape_cast %33 : vector<1x4x4xbf16> to vector<4x4xbf16>
    %cst_30 = arith.constant dense<0.000000e+00> : vector<4x128xf32>
    %35 = tpu.matmul %34, %32, %cst_30 {dimension_numbers = #tpu.dot_dimension_numbers<[1], [0], [0], [1], [0, 0, 1, 1], [], []>} : vector<4x4xbf16>, vector<4x128xbf16>, vector<4x128xf32> -> vector<4x128xf32>
    %36 = arith.addf %30, %35 : vector<4x128xf32>
    %c0_31 = arith.constant 0 : index
    %c0_32 = arith.constant 0 : index
    %c18 = arith.constant 18 : index
    %37 = vector.load %arg2[%c0_31, %c0_32, %c18] : memref<1x4x162xbf16, #tpu.memory_space<vmem>>, vector<1x4x128xbf16>
    %38 = vector.shape_cast %37 : vector<1x4x128xbf16> to vector<4x128xbf16>
    %39 = vector.broadcast %1 : vector<1x128xbf16> to vector<4x128xbf16>
    %40 = arith.mulf %38, %39 : vector<4x128xbf16>
    %c5 = arith.constant 5 : index
    %c0_33 = arith.constant 0 : index
    %c0_34 = arith.constant 0 : index
    %41 = vector.load %arg5[%c5, %c0_33, %c0_34] : memref<9x4x4xbf16, #tpu.memory_space<vmem>>, vector<1x4x4xbf16>
    %42 = vector.shape_cast %41 : vector<1x4x4xbf16> to vector<4x4xbf16>
    %cst_35 = arith.constant dense<0.000000e+00> : vector<4x128xf32>
    %43 = tpu.matmul %42, %40, %cst_35 {dimension_numbers = #tpu.dot_dimension_numbers<[1], [0], [0], [1], [0, 0, 1, 1], [], []>} : vector<4x4xbf16>, vector<4x128xbf16>, vector<4x128xf32> -> vector<4x128xf32>
    %44 = arith.addf %36, %43 : vector<4x128xf32>
    %c0_36 = arith.constant 0 : index
    %c0_37 = arith.constant 0 : index
    %c32 = arith.constant 32 : index
    %45 = vector.load %arg2[%c0_36, %c0_37, %c32] : memref<1x4x162xbf16, #tpu.memory_space<vmem>>, vector<1x4x128xbf16>
    %46 = vector.shape_cast %45 : vector<1x4x128xbf16> to vector<4x128xbf16>
    %47 = vector.broadcast %0 : vector<1x128xbf16> to vector<4x128xbf16>
    %48 = arith.mulf %46, %47 : vector<4x128xbf16>
    %c6 = arith.constant 6 : index
    %c0_38 = arith.constant 0 : index
    %c0_39 = arith.constant 0 : index
    %49 = vector.load %arg5[%c6, %c0_38, %c0_39] : memref<9x4x4xbf16, #tpu.memory_space<vmem>>, vector<1x4x4xbf16>
    %50 = vector.shape_cast %49 : vector<1x4x4xbf16> to vector<4x4xbf16>
    %cst_40 = arith.constant dense<0.000000e+00> : vector<4x128xf32>
    %51 = tpu.matmul %50, %48, %cst_40 {dimension_numbers = #tpu.dot_dimension_numbers<[1], [0], [0], [1], [0, 0, 1, 1], [], []>} : vector<4x4xbf16>, vector<4x128xbf16>, vector<4x128xf32> -> vector<4x128xf32>
    %52 = arith.addf %44, %51 : vector<4x128xf32>
    %c0_41 = arith.constant 0 : index
    %c0_42 = arith.constant 0 : index
    %c33 = arith.constant 33 : index
    %53 = vector.load %arg2[%c0_41, %c0_42, %c33] : memref<1x4x162xbf16, #tpu.memory_space<vmem>>, vector<1x4x128xbf16>
    %54 = vector.shape_cast %53 : vector<1x4x128xbf16> to vector<4x128xbf16>
    %c7 = arith.constant 7 : index
    %c0_43 = arith.constant 0 : index
    %c0_44 = arith.constant 0 : index
    %55 = vector.load %arg5[%c7, %c0_43, %c0_44] : memref<9x4x4xbf16, #tpu.memory_space<vmem>>, vector<1x4x4xbf16>
    %56 = vector.shape_cast %55 : vector<1x4x4xbf16> to vector<4x4xbf16>
    %cst_45 = arith.constant dense<0.000000e+00> : vector<4x128xf32>
    %57 = tpu.matmul %56, %54, %cst_45 {dimension_numbers = #tpu.dot_dimension_numbers<[1], [0], [0], [1], [0, 0, 1, 1], [], []>} : vector<4x4xbf16>, vector<4x128xbf16>, vector<4x128xf32> -> vector<4x128xf32>
    %58 = arith.addf %52, %57 : vector<4x128xf32>
    %c0_46 = arith.constant 0 : index
    %c0_47 = arith.constant 0 : index
    %c34 = arith.constant 34 : index
    %59 = vector.load %arg2[%c0_46, %c0_47, %c34] : memref<1x4x162xbf16, #tpu.memory_space<vmem>>, vector<1x4x128xbf16>
    %60 = vector.shape_cast %59 : vector<1x4x128xbf16> to vector<4x128xbf16>
    %61 = vector.broadcast %1 : vector<1x128xbf16> to vector<4x128xbf16>
    %62 = arith.mulf %60, %61 : vector<4x128xbf16>
    %c8 = arith.constant 8 : index
    %c0_48 = arith.constant 0 : index
    %c0_49 = arith.constant 0 : index
    %63 = vector.load %arg5[%c8, %c0_48, %c0_49] : memref<9x4x4xbf16, #tpu.memory_space<vmem>>, vector<1x4x4xbf16>
    %64 = vector.shape_cast %63 : vector<1x4x4xbf16> to vector<4x4xbf16>
    %cst_50 = arith.constant dense<0.000000e+00> : vector<4x128xf32>
    %65 = tpu.matmul %64, %62, %cst_50 {dimension_numbers = #tpu.dot_dimension_numbers<[1], [0], [0], [1], [0, 0, 1, 1], [], []>} : vector<4x4xbf16>, vector<4x128xbf16>, vector<4x128xf32> -> vector<4x128xf32>
    %66 = arith.addf %58, %65 : vector<4x128xf32>
    %c0_51 = arith.constant 0 : index
    %c0_52 = arith.constant 0 : index
    %67 = vector.load %arg6[%c0_51, %c0_52] : memref<4x1xf32, #tpu.memory_space<vmem>>, vector<4x1xf32>
    %68 = vector.broadcast %67 : vector<4x1xf32> to vector<4x128xf32>
    %69 = arith.addf %66, %68 : vector<4x128xf32>
    %cst_53 = arith.constant 0.000000e+00 : f32
    %70 = vector.broadcast %cst_53 : f32 to vector<4x128xf32>
    %71 = arith.cmpf oge, %69, %70 : vector<4x128xf32>
    %cst_54 = arith.constant 0.00999999977 : f32
    %72 = vector.broadcast %cst_54 : f32 to vector<4x128xf32>
    %73 = arith.mulf %72, %69 : vector<4x128xf32>
    %74 = arith.select %71, %69, %73 : vector<4x128xi1>, vector<4x128xf32>
    %c0_55 = arith.constant 0 : index
    %c0_56 = arith.constant 0 : index
    %c0_57 = arith.constant 0 : index
    %75 = vector.load %arg7[%c0_55, %c0_56, %c0_57] : memref<1x4x128xf32, #tpu.memory_space<vmem>>, vector<1x4x128xf32>
    %76 = vector.shape_cast %75 : vector<1x4x128xf32> to vector<4x128xf32>
    %77 = vector.shape_cast %74 : vector<4x128xf32> to vector<1x4x128xf32>
    tpu.vector_store %arg7[%c0_55, %c0_56, %c0_57], %77 {strides = array<i32>} : memref<1x4x128xf32, #tpu.memory_space<vmem>>, vector<1x4x128xf32>,
    return
  }
  func.func @transform_0(%arg0: i32, %arg1: i32) -> (i32, i32, i32) {
    %c2_i32 = arith.constant 2 : i32
    %0 = arith.muli %arg0, %c2_i32 : i32
    %1 = arith.addi %0, %arg1 : i32
    %c0_i32 = arith.constant 0 : i32
    %c0_i32_0 = arith.constant 0 : i32
    %c0_i32_1 = arith.constant 0 : i32
    return %1, %c0_i32, %c0_i32_0 : i32, i32, i32
  }
  func.func @transform_1(%arg0: i32, %arg1: i32) -> (i32, i32) {
    %c0_i32 = arith.constant 0 : i32
    %c0_i32_0 = arith.constant 0 : i32
    %c0_i32_1 = arith.constant 0 : i32
    return %c0_i32, %c0_i32_0 : i32, i32
  }
  func.func @transform_2(%arg0: i32, %arg1: i32) -> (i32, i32) {
    %c0_i32 = arith.constant 0 : i32
    %c0_i32_0 = arith.constant 0 : i32
    %c0_i32_1 = arith.constant 0 : i32
    return %c0_i32, %c0_i32_0 : i32, i32
  }
  func.func @transform_3(%arg0: i32, %arg1: i32) -> (i32, i32, i32) {
    %c0_i32 = arith.constant 0 : i32
    %c0_i32_0 = arith.constant 0 : i32
    %c0_i32_1 = arith.constant 0 : i32
    %c0_i32_2 = arith.constant 0 : i32
    return %c0_i32, %c0_i32_0, %c0_i32_1 : i32, i32, i32
  }
  func.func @transform_4(%arg0: i32, %arg1: i32) -> (i32, i32) {
    %c0_i32 = arith.constant 0 : i32
    %c0_i32_0 = arith.constant 0 : i32
    %c0_i32_1 = arith.constant 0 : i32
    return %c0_i32, %c0_i32_0 : i32, i32
  }
  func.func @transform_5(%arg0: i32, %arg1: i32) -> (i32, i32, i32) {
    %c0_i32 = arith.constant 0 : i32
    %c0_i32_0 = arith.constant 0 : i32
    return %arg0, %c0_i32, %arg1 : i32, i32, i32
  }
}

</mosaic_0001>

<llo_original>
// kernel: tile.8
$region0: #{tile.8}
  #allocation0 [shape = 's32[1]{0}', space=sflag, size = 0x4, scoped, tag = 'scoped memory for tile.8']
  %s0 = inlined_call_operand.vmem [shape: f32[4], index: 0, kind: input, shape index: {}]
  %s1 = inlined_call_operand.vmem [shape: f32[4,4], index: 1, kind: output, shape index: {}]
  // Predicated region
  $region2: #{tile.8} parent=0 // pred_check
    _
  $region3: #{tile.8} parent=0 // pred_check_branch
    %3 = sbr.rel (0) target = $region5
  $region4: #{tile.8} parent=0 // pred_region
    _
  $region5: #{tile.8} parent=0 // pred_fallthru
    _
  %v4 = vld [vmem:[%s0] ss:$0 sm:$0xff]
  %5 = vst [vmem:[%s1] sm:$0xf] %v4

// kernel: tile.0
$region0: #{tile.0}
  %s0 = inlined_call_operand.vmem [shape: f32[4,4], index: 0, kind: input, shape index: {}]
  %s1 = inlined_call_operand.vmem [shape: f32[16,1], index: 1, kind: output, shape index: {}]
  $region1: #{tile.0} parent=0
    #allocation0 [shape = 'u8[4096]{0}', space=vmem, size = 0x1000, scoped, tag = 'scoped mem for input reshape']
    %s3 = sshllo.u32 0, 4
    %v4 = vld [vmem:[%s0] sm:%s3]
    %5 = vst [vmem:[#allocation0] sm:%s3] %v4
    %v6 = vld [vmem:[#allocation0] sm:$0xf]
    %vm7 = vcmask 7168
    %8 = vst.msk [vmem:[%s1] ss:$4 sm:$0xf] %vm7, %v6
    %v9 = vld [vmem:[#allocation0] sm:$0xf]
    %10 = vrot.lane.b32.xlu0 %v9, 127
    %v11 = vpop.permute.xlu0 %10
    %vm12 = vcmask 7168
    %s13 = scalar_lea.vmem %s1, 1
    %14 = vst.msk [vmem:[%s13] ss:$4 sm:$0xf] %vm12, %v11
    %v15 = vld [vmem:[#allocation0] sm:$0xf]
    %16 = vrot.lane.b32.xlu0 %v15, 126
    %v17 = vpop.permute.xlu0 %16
    %vm18 = vcmask 7168
    %s19 = scalar_lea.vmem %s1, 2
    %20 = vst.msk [vmem:[%s19] ss:$4 sm:$0xf] %vm18, %v17
    %v21 = vld [vmem:[#allocation0] sm:$0xf]
    %22 = vrot.lane.b32.xlu0 %v21, 125
    %v23 = vpop.permute.xlu0 %22
    %vm24 = vcmask 7168
    %s25 = scalar_lea.vmem %s1, 3
    %26 = vst.msk [vmem:[%s25] ss:$4 sm:$0xf] %vm24, %v23

// kernel: up_forward.2
$region0: #{up_forward.2}
  #allocation0 [shape = 'u32[]', space=smem, size = 0x4, offset = 0x4, fixed_abs, tag = 'smem constant byte address 0x4 - core index']
  #allocation1 [shape = 'u32[144,128]{1,0:T(1,128)}', space=vmem, size = 0x12000, scoped, tag = 'internal scratch']
  %s0 = inlined_call_operand.vmem [shape: f32[2,8,64], index: 0, kind: input, shape index: {}]
  %s1 = inlined_call_operand.vmem [shape: bf16[16,8], index: 1, kind: input, shape index: {}]
  %s2 = inlined_call_operand.vmem [shape: f32[16,1], index: 2, kind: input, shape index: {}]
  %s3 = inlined_call_operand.vmem [shape: bf16[2,16,64], index: 3, kind: output, shape index: {}]
  %s4 = sld [smem:[#allocation0]]
  $region45: #{up_forward.2} parent=0
    _
  %s6 = ssub.s32 1, %s4
  %s7 = scalar_select 0, %s6, %s4
  loop: start=0, step=1, limit=4
  $region2: #{up_forward.2} parent=0 // loop_pre_header
    _
  $region3: #{up_forward.2} parent=0 // loop_header
    %s9 = sphi 0, %s13
    %p10 = scmp.ge.s32.totalorder %s9, 4
    %s16 = sphi 0, %s28
    %s17 = sphi 0, %s24
    %s18 = sphi 0, %s16
    %s19 = sphi 0, %s17
    %s20 = sphi 0, %s18
    %s21 = sphi 0, %s19
    %s33 = sphi 0, %s35
    %s36 = sphi 0, %s33
    %s37 = sphi 0, %s36
    %s53 = sphi 0, %s37
    %s57 = sphi 0, %s57
    %s59 = sphi 0, %s57
    %s60 = sphi 0, %s59
    %s74 = sphi 0, %s60
    %s78 = sphi 0, %s78
    %s80 = sphi 0, %s78
    %s81 = sphi 0, %s80
    %s95 = sphi 0, %s81
    %s103 = sphi 0, %s105
    %s106 = sphi 0, %s103
    %s107 = sphi 0, %s106
    %s123 = sphi 0, %s107
  $region4: #{up_forward.2} parent=0 // loop_header_branch
    %12 = sbr.rel (%p10) target = $region8
  $region5: #{up_forward.2} parent=0 // loop_body
    %s14 = ssub.s32 %s9, 1
    %s15 = ssub.s32 %s9, 2
    %s22 = sadd.s32 1, %s17
    %p23 = scmp.ge.s32.totalorder %s22, 1
    %s24 = scalar_select %p23, 0, %s22
    %s25 = sadd.s32 1, %s16
    %s26 = scalar_select %p23, %s25, %s16
    %p27 = scmp.ge.s32.totalorder %s26, 2
    %s28 = scalar_select %p27, 0, %s26
    %s29 = ssub.s32 %s16, %s28
    %s30 = ssub.s32 %s17, %s24
    %s31 = sor.u32 %s29, %s30
    %p32 = scmp.eq.s32.totalorder %s31, 0
    %s34 = sadd.s32 %s33, 1
    %s35 = scalar_select %p32, %s33, %s34
    %p38 = pneg %p32
    %p39 = scmp.eq.s32.totalorder %s9, 1
    %p40 = por %p38, %p39
    %p41 = scmp.ne.s32.totalorder %s33, %s36
    %p42 = scmp.eq.s32.totalorder %s9, 0
    %p43 = por %p41, %p42
    %p44 = scmp.ne.s32.totalorder %s33, %s36
    %p45 = scmp.eq.s32.totalorder %s14, 1
    %p46 = por %p44, %p45
    %p47 = scmp.ne.s32.totalorder %s36, %s37
    %p48 = scmp.eq.s32.totalorder %s14, 0
    %p49 = por %p47, %p48
    %p50 = scmp.ne.s32.totalorder %s36, %s37
    %p51 = scmp.eq.s32.totalorder %s15, 1
    %p52 = por %p50, %p51
    %p54 = scmp.ne.s32.totalorder %s37, %s53
    %p55 = scmp.eq.s32.totalorder %s15, 0
    %p56 = por %p54, %p55
    %s58 = sadd.s32 %s57, 1
    %p61 = scmp.eq.s32.totalorder %s9, 1
    %p62 = scmp.ne.s32.totalorder %s57, %s59
    %p63 = scmp.eq.s32.totalorder %s9, 0
    %p64 = por %p62, %p63
    %p65 = scmp.ne.s32.totalorder %s57, %s59
    %p66 = scmp.eq.s32.totalorder %s14, 1
    %p67 = por %p65, %p66
    %p68 = scmp.ne.s32.totalorder %s59, %s60
    %p69 = scmp.eq.s32.totalorder %s14, 0
    %p70 = por %p68, %p69
    %p71 = scmp.ne.s32.totalorder %s59, %s60
    %p72 = scmp.eq.s32.totalorder %s15, 1
    %p73 = por %p71, %p72
    %p75 = scmp.ne.s32.totalorder %s60, %s74
    %p76 = scmp.eq.s32.totalorder %s15, 0
    %p77 = por %p75, %p76
    %s79 = sadd.s32 %s78, 1
    %p82 = scmp.eq.s32.totalorder %s9, 1
    %p83 = scmp.ne.s32.totalorder %s78, %s80
    %p84 = scmp.eq.s32.totalorder %s9, 0
    %p85 = por %p83, %p84
    %p86 = scmp.ne.s32.totalorder %s78, %s80
    %p87 = scmp.eq.s32.totalorder %s14, 1
    %p88 = por %p86, %p87
    %p89 = scmp.ne.s32.totalorder %s80, %s81
    %p90 = scmp.eq.s32.totalorder %s14, 0
    %p91 = por %p89, %p90
    %p92 = scmp.ne.s32.totalorder %s80, %s81
    %p93 = scmp.eq.s32.totalorder %s15, 1
    %p94 = por %p92, %p93
    %p96 = scmp.ne.s32.totalorder %s81, %s95
    %p97 = scmp.eq.s32.totalorder %s15, 0
    %p98 = por %p96, %p97
    %s99 = ssub.s32 %s16, %s28
    %s100 = ssub.s32 %s17, %s24
    %s101 = sor.u32 %s99, %s100
    %p102 = scmp.eq.s32.totalorder %s101, 0
    %s104 = sadd.s32 %s103, 1
    %s105 = scalar_select %p102, %s103, %s104
    %p108 = pneg %p102
    %p109 = scmp.eq.s32.totalorder %s9, 1
    %p110 = por %p108, %p109
    %p111 = scmp.ne.s32.totalorder %s103, %s106
    %p112 = scmp.eq.s32.totalorder %s9, 0
    %p113 = por %p111, %p112
    %p114 = scmp.ne.s32.totalorder %s103, %s106
    %p115 = scmp.eq.s32.totalorder %s14, 1
    %p116 = por %p114, %p115
    %p117 = scmp.ne.s32.totalorder %s106, %s107
    %p118 = scmp.eq.s32.totalorder %s14, 0
    %p119 = por %p117, %p118
    %p120 = scmp.ne.s32.totalorder %s106, %s107
    %p121 = scmp.eq.s32.totalorder %s15, 1
    %p122 = por %p120, %p121
    %p124 = scmp.ne.s32.totalorder %s107, %s123
    %p125 = scmp.eq.s32.totalorder %s15, 0
    %p126 = por %p124, %p125
    %p127 = scmp.le.s32.totalorder 1, %s9
    %p128 = scmp.lt.s32.totalorder %s9, 3
    %p129 = pnand %p127, %p128
    %p130 = pneg %p129
    // Predicated region
    $region9: #{up_forward.2} parent=5 // pred_check
      _
    $region10: #{up_forward.2} parent=5 // pred_check_branch
      %132 = sbr.rel (%p129) target = $region12
    $region11: #{up_forward.2} parent=5 // pred_region
      %s133 = ssub.s32 %s9, 1
      // Predicated region
      $region13: #{up_forward.2} parent=11 // pred_check
        %p134 = pneg %p70
      $region14: #{up_forward.2} parent=11 // pred_check_branch
        %136 = sbr.rel (%p134) target = $region16
      $region15: #{up_forward.2} parent=11 // pred_region
        _
      $region16: #{up_forward.2} parent=11 // pred_fallthru
        _
      // Predicated region
      $region17: #{up_forward.2} parent=11 // pred_check
        %p137 = pneg %p91
      $region18: #{up_forward.2} parent=11 // pred_check_branch
        %139 = sbr.rel (%p137) target = $region20
      $region19: #{up_forward.2} parent=11 // pred_region
        _
      $region20: #{up_forward.2} parent=11 // pred_fallthru
        _
    $region12: #{up_forward.2} parent=5 // pred_fallthru
      _
    %p140 = scmp.lt.s32.totalorder %s9, 2
    // Predicated region
    $region21: #{up_forward.2} parent=5 // pred_check
      %p141 = pneg %p140
    $region22: #{up_forward.2} parent=5 // pred_check_branch
      %143 = sbr.rel (%p141) target = $region24
    $region23: #{up_forward.2} parent=5 // pred_region
      // Predicated region
      $region25: #{up_forward.2} parent=23 // pred_check
        %p144 = pneg %p43
      $region26: #{up_forward.2} parent=23 // pred_check_branch
        %146 = sbr.rel (%p144) target = $region28
      $region27: #{up_forward.2} parent=23 // pred_region
        %p147 = scmp.lt.s32.totalorder %s16, 1
        %s148 = scalar_select %p147, %s16, 1
        %p149 = scmp.lt.s32.totalorder %s17, 0
        %s150 = scalar_select %p149, %s17, 0
        %s151 = sadd.s32 %s150, %s148
        %s152 = smul.addr %s151, 8
        %s153 = scalar_lea.vmem %s0, %s152
      $region28: #{up_forward.2} parent=23 // pred_fallthru
        _
    $region24: #{up_forward.2} parent=5 // pred_fallthru
      _
    %p154 = scmp.le.s32.totalorder 1, %s9
    %p155 = scmp.lt.s32.totalorder %s9, 3
    %p156 = pnand %p154, %p155
    %p157 = pneg %p156
    // Predicated region
    $region29: #{up_forward.2} parent=5 // pred_check
      _
    $region30: #{up_forward.2} parent=5 // pred_check_branch
      %159 = sbr.rel (%p156) target = $region32
    $region31: #{up_forward.2} parent=5 // pred_region
      %s160 = ssub.s32 %s9, 1
      %p161 = scmp.lt.s32.totalorder %s18, 1
      %s162 = scalar_select %p161, %s18, 1
      %p163 = scmp.lt.s32.totalorder %s19, 0
      %s164 = scalar_select %p163, %s19, 0
      %s165 = sadd.s32 %s164, %s162
      %s166 = smul.addr %s165, 8
      %s167 = scalar_lea.vmem %s0, %s166
      %p168 = pneg %p49
      %p169 = pneg %p46
      %p170 = pneg %p70
      %p171 = pneg %p67
      %p172 = pneg %p91
      %p173 = pneg %p88
      %p174 = pneg %p119
      %p175 = pneg %p116
      %p176 = scmp.lt.s32.totalorder %s18, 1
      %s177 = scalar_select %p176, %s18, 1
      %p178 = scmp.lt.s32.totalorder %s19, 0
      %s179 = scalar_select %p178, %s19, 0
      %s180 = smul.addr %s177, 2
      %s181 = sadd.s32 %s179, %s180
      %s182 = smul.addr %s181, 4
      %s183 = scalar_lea.vmem %s3, %s182
      %p184 = scmp.lt.s32.totalorder %s18, 1
      %s185 = scalar_select %p184, %s18, 1
      %p186 = scmp.lt.s32.totalorder %s19, 0
      %s187 = scalar_select %p186, %s19, 0
      %s188 = sadd.s32 %s187, %s185
      %s189 = smul.addr %s188, 8
      %s190 = scalar_lea.vmem %s0, %s189
      %p191 = scmp.lt.s32.totalorder %s18, 1
      %s192 = scalar_select %p191, %s18, 1
      %p193 = scmp.lt.s32.totalorder %s19, 0
      %s194 = scalar_select %p193, %s19, 0
      %s195 = smul.addr %s192, 2
      %s196 = sadd.s32 %s194, %s195
      %s197 = smul.addr %s196, 4
      %s198 = scalar_lea.vmem %s3, %s197
      %v200 = vld [vmem:[%s190] sm:$0xff]
      %v201 = vpack.c.bf16 %v200, %v200
      %v202 = vld [vmem:[%s1] sm:$0xf]
      %v203 = vld [vmem:[%s1 + $0x4] sm:$0xf]
      %v204 = vld [vmem:[%s2] sm:$0xff]
      %v205 = vld [vmem:[%s2 + $0x8] sm:$0xff]
      %207 = vset.pattern.permute.xlu0 0
      %208 = vperm.xlu0 %207, %v204
      %v209 = vpop.permute.xlu0 %208
      %212 = vset.pattern.permute.xlu0 0
      %213 = vperm.xlu0 %212, %v205
      %v214 = vpop.permute.xlu0 %213
      %v218 = vunpack.c.l.b16 %v202
      %v219 = vunpack.c.l.b16 %v203
      %v220 = vpack.c.b16 %v219, %v218
      %vm221 = vcmask 64512
      %v223 = vsel %vm221, %v220, 0
      %vm225 = vcmask 1043456
      %v227 = vsel %vm225, %v201, 0
      %229 = vmatprep.subr.bf16.mxu0 0
      %230 = vmatpush1.bf16.msra.mxu0 %v227
      %231 = vmatprep.subr.bf16.mxu0 0
      %232 = vmatpush1.bf16.msra.mxu0 0
      %233 = vmatprep.subr.bf16.mxu0 0
      %234 = vmatpush1.bf16.msra.mxu0 0
      %235 = vmatprep.subr.bf16.mxu0 0
      %236 = vmatpush1.bf16.msra.mxu0 0
      %237 = vmatprep.subr.bf16.mxu0 0
      %238 = vmatpush1.bf16.msra.mxu0 0
      %239 = vmatprep.subr.bf16.mxu0 0
      %240 = vmatpush1.bf16.msra.mxu0 0
      %241 = vmatprep.subr.bf16.mxu0 0
      %242 = vmatpush1.bf16.msra.mxu0 0
      %243 = vmatprep.subr.bf16.mxu0 0
      %244 = vmatpush1.bf16.msra.mxu0 0
      %245 = vmatprep.subr.bf16.mxu0 0
      %246 = vmatpush1.bf16.msra.mxu0 0
      %247 = vmatprep.subr.bf16.mxu0 0
      %248 = vmatpush1.bf16.msra.mxu0 0
      %249 = vmatprep.subr.bf16.mxu0 0
      %250 = vmatpush1.bf16.msra.mxu0 0
      %251 = vmatprep.subr.bf16.mxu0 0
      %252 = vmatpush1.bf16.msra.mxu0 0
      %253 = vmatprep.subr.bf16.mxu0 0
      %254 = vmatpush1.bf16.msra.mxu0 0
      %255 = vmatprep.subr.bf16.mxu0 0
      %256 = vmatpush1.bf16.msra.mxu0 0
      %257 = vmatprep.subr.bf16.mxu0 0
      %258 = vmatpush1.bf16.msra.mxu0 0
      %259 = vmatprep.subr.bf16.mxu0 0
      %260 = vmatpush1.bf16.msra.mxu0 0
      %261 = vmatprep.mubr.bf16.mxu0 0
      %262 = vmatmul.mubr.bf16.gmra.mrb[0].mxu0 %v223
      %v263 = vpop.f32.mrb[0].mxu0
      %v264 = vadd.f32 %v209, %v263
      %v265 = vpop.f32.mrb[0].mxu0
      %v266 = vpop.f32.mrb[0].mxu0
      %v267 = vadd.f32 %v214, %v266
      %v268 = vpop.f32.mrb[0].mxu0
      %269 = vdwg.mxu0
      %vm270 = vcmp.ge.f32.partialorder %v264, 0.0
      %vm271 = vcmp.ge.f32.partialorder %v267, 0.0
      %v272 = vmul.f32 %v264, 0.01
      %v273 = vmul.f32 %v267, 0.01
      %v274 = vsel %vm270, %v264, %v272
      %v275 = vsel %vm271, %v267, %v273
      %v276 = vpack.c.bf16 %v275, %v274
      %v278 = vunpack.c.l.b16 %v276
      %v279 = vunpack.c.h.b16 %v276
      %v280 = vpack.c.b16 %v278, %v278
      %v281 = vpack.c.b16 %v279, %v279
      %vm284 = vcmask 519168
      %285 = vst.msk [vmem:[%s198] sm:$0xf] %vm284, %v280
      %286 = vst.msk [vmem:[%s198 + $0x4] sm:$0xf] %vm284, %v281
      %p287 = scmp.lt.s32.totalorder %s18, 1
      %s288 = scalar_select %p287, %s18, 1
      %p289 = scmp.lt.s32.totalorder %s19, 0
      %s290 = scalar_select %p289, %s19, 0
      %s291 = smul.addr %s288, 2
      %s292 = sadd.s32 %s290, %s291
      %s293 = smul.addr %s292, 4
      %s294 = scalar_lea.vmem %s3, %s293
      // Predicated region
      $region33: #{up_forward.2} parent=31 // pred_check
        %p295 = pneg %p116
      $region34: #{up_forward.2} parent=31 // pred_check_branch
        %297 = sbr.rel (%p295) target = $region36
      $region35: #{up_forward.2} parent=31 // pred_region
        _
      $region36: #{up_forward.2} parent=31 // pred_fallthru
        _
    $region32: #{up_forward.2} parent=5 // pred_fallthru
      _
    %p298 = scmp.le.s32.totalorder 2, %s9
    // Predicated region
    $region37: #{up_forward.2} parent=5 // pred_check
      %p299 = pneg %p298
    $region38: #{up_forward.2} parent=5 // pred_check_branch
      %301 = sbr.rel (%p299) target = $region40
    $region39: #{up_forward.2} parent=5 // pred_region
      %s302 = ssub.s32 %s9, 2
      // Predicated region
      $region41: #{up_forward.2} parent=39 // pred_check
        %p303 = pneg %p122
      $region42: #{up_forward.2} parent=39 // pred_check_branch
        %305 = sbr.rel (%p303) target = $region44
      $region43: #{up_forward.2} parent=39 // pred_region
        %p306 = scmp.lt.s32.totalorder %s20, 1
        %s307 = scalar_select %p306, %s20, 1
        %p308 = scmp.lt.s32.totalorder %s21, 0
        %s309 = scalar_select %p308, %s21, 0
        %s310 = smul.addr %s307, 2
        %s311 = sadd.s32 %s309, %s310
        %s312 = smul.addr %s311, 4
        %s313 = scalar_lea.vmem %s3, %s312
      $region44: #{up_forward.2} parent=39 // pred_fallthru
        _
    $region40: #{up_forward.2} parent=5 // pred_fallthru
      _
  $region6: #{up_forward.2} parent=0 // loop_footer
    %s13 = sadd.s32 1, %s9
  $region7: #{up_forward.2} parent=0 // loop_footer_branch
    %8 = sbr.rel target = $region3
  $region8: #{up_forward.2} parent=0 // loop_exit
    _

// kernel: up_forward.3
$region0: #{up_forward.3}
  #allocation0 [shape = 'u32[]', space=smem, size = 0x4, offset = 0x4, fixed_abs, tag = 'smem constant byte address 0x4 - core index']
  #allocation1 [shape = 'u32[144,128]{1,0:T(1,128)}', space=vmem, size = 0x12000, scoped, tag = 'internal scratch']
  %s0 = inlined_call_operand.vmem [shape: bf16[4,4,162], index: 0, kind: input, shape index: {}]
  %s1 = inlined_call_operand.vmem [shape: bf16[1,128], index: 1, kind: input, shape index: {}]
  %s2 = inlined_call_operand.vmem [shape: bf16[1,128], index: 2, kind: input, shape index: {}]
  %s3 = inlined_call_operand.vmem [shape: bf16[9,4,4], index: 3, kind: input, shape index: {}]
  %s4 = inlined_call_operand.vmem [shape: f32[4,1], index: 4, kind: input, shape index: {}]
  %s5 = inlined_call_operand.vmem [shape: f32[2,4,256], index: 5, kind: output, shape index: {}]
  %s6 = sld [smem:[#allocation0]]
  $region53: #{up_forward.3} parent=0
    _
  %s8 = ssub.s32 1, %s6
  %s9 = scalar_select 0, %s8, %s6
  loop: start=0, step=1, limit=6
  $region2: #{up_forward.3} parent=0 // loop_pre_header
    _
  $region3: #{up_forward.3} parent=0 // loop_header
    %s11 = sphi 0, %s15
    %p12 = scmp.ge.s32.totalorder %s11, 6
    %s18 = sphi 0, %s30
    %s19 = sphi 0, %s26
    %s20 = sphi 0, %s18
    %s21 = sphi 0, %s19
    %s22 = sphi 0, %s20
    %s23 = sphi 0, %s21
    %s37 = sphi 0, %s39
    %s40 = sphi 0, %s37
    %s41 = sphi 0, %s40
    %s57 = sphi 0, %s41
    %s61 = sphi 0, %s61
    %s63 = sphi 0, %s61
    %s64 = sphi 0, %s63
    %s78 = sphi 0, %s64
    %s82 = sphi 0, %s82
    %s84 = sphi 0, %s82
    %s85 = sphi 0, %s84
    %s99 = sphi 0, %s85
    %s103 = sphi 0, %s103
    %s105 = sphi 0, %s103
    %s106 = sphi 0, %s105
    %s120 = sphi 0, %s106
    %s124 = sphi 0, %s124
    %s126 = sphi 0, %s124
    %s127 = sphi 0, %s126
    %s141 = sphi 0, %s127
    %s149 = sphi 0, %s151
    %s152 = sphi 0, %s149
    %s153 = sphi 0, %s152
    %s169 = sphi 0, %s153
  $region4: #{up_forward.3} parent=0 // loop_header_branch
    %14 = sbr.rel (%p12) target = $region8
  $region5: #{up_forward.3} parent=0 // loop_body
    %s16 = ssub.s32 %s11, 1
    %s17 = ssub.s32 %s11, 2
    %s24 = sadd.s32 1, %s19
    %p25 = scmp.ge.s32.totalorder %s24, 2
    %s26 = scalar_select %p25, 0, %s24
    %s27 = sadd.s32 1, %s18
    %s28 = scalar_select %p25, %s27, %s18
    %p29 = scmp.ge.s32.totalorder %s28, 2
    %s30 = scalar_select %p29, 0, %s28
    %s31 = smul.u32 %s18, 2
    %s32 = sadd.s32 %s31, %s19
    %s33 = smul.u32 %s30, 2
    %s34 = sadd.s32 %s33, %s26
    %s35 = ssub.s32 %s32, %s34
    %p36 = scmp.eq.s32.totalorder %s35, 0
    %s38 = sadd.s32 %s37, 1
    %s39 = scalar_select %p36, %s37, %s38
    %p42 = pneg %p36
    %p43 = scmp.eq.s32.totalorder %s11, 3
    %p44 = por %p42, %p43
    %p45 = scmp.ne.s32.totalorder %s37, %s40
    %p46 = scmp.eq.s32.totalorder %s11, 0
    %p47 = por %p45, %p46
    %p48 = scmp.ne.s32.totalorder %s37, %s40
    %p49 = scmp.eq.s32.totalorder %s16, 3
    %p50 = por %p48, %p49
    %p51 = scmp.ne.s32.totalorder %s40, %s41
    %p52 = scmp.eq.s32.totalorder %s16, 0
    %p53 = por %p51, %p52
    %p54 = scmp.ne.s32.totalorder %s40, %s41
    %p55 = scmp.eq.s32.totalorder %s17, 3
    %p56 = por %p54, %p55
    %p58 = scmp.ne.s32.totalorder %s41, %s57
    %p59 = scmp.eq.s32.totalorder %s17, 0
    %p60 = por %p58, %p59
    %s62 = sadd.s32 %s61, 1
    %p65 = scmp.eq.s32.totalorder %s11, 3
    %p66 = scmp.ne.s32.totalorder %s61, %s63
    %p67 = scmp.eq.s32.totalorder %s11, 0
    %p68 = por %p66, %p67
    %p69 = scmp.ne.s32.totalorder %s61, %s63
    %p70 = scmp.eq.s32.totalorder %s16, 3
    %p71 = por %p69, %p70
    %p72 = scmp.ne.s32.totalorder %s63, %s64
    %p73 = scmp.eq.s32.totalorder %s16, 0
    %p74 = por %p72, %p73
    %p75 = scmp.ne.s32.totalorder %s63, %s64
    %p76 = scmp.eq.s32.totalorder %s17, 3
    %p77 = por %p75, %p76
    %p79 = scmp.ne.s32.totalorder %s64, %s78
    %p80 = scmp.eq.s32.totalorder %s17, 0
    %p81 = por %p79, %p80
    %s83 = sadd.s32 %s82, 1
    %p86 = scmp.eq.s32.totalorder %s11, 3
    %p87 = scmp.ne.s32.totalorder %s82, %s84
    %p88 = scmp.eq.s32.totalorder %s11, 0
    %p89 = por %p87, %p88
    %p90 = scmp.ne.s32.totalorder %s82, %s84
    %p91 = scmp.eq.s32.totalorder %s16, 3
    %p92 = por %p90, %p91
    %p93 = scmp.ne.s32.totalorder %s84, %s85
    %p94 = scmp.eq.s32.totalorder %s16, 0
    %p95 = por %p93, %p94
    %p96 = scmp.ne.s32.totalorder %s84, %s85
    %p97 = scmp.eq.s32.totalorder %s17, 3
    %p98 = por %p96, %p97
    %p100 = scmp.ne.s32.totalorder %s85, %s99
    %p101 = scmp.eq.s32.totalorder %s17, 0
    %p102 = por %p100, %p101
    %s104 = sadd.s32 %s103, 1
    %p107 = scmp.eq.s32.totalorder %s11, 3
    %p108 = scmp.ne.s32.totalorder %s103, %s105
    %p109 = scmp.eq.s32.totalorder %s11, 0
    %p110 = por %p108, %p109
    %p111 = scmp.ne.s32.totalorder %s103, %s105
    %p112 = scmp.eq.s32.totalorder %s16, 3
    %p113 = por %p111, %p112
    %p114 = scmp.ne.s32.totalorder %s105, %s106
    %p115 = scmp.eq.s32.totalorder %s16, 0
    %p116 = por %p114, %p115
    %p117 = scmp.ne.s32.totalorder %s105, %s106
    %p118 = scmp.eq.s32.totalorder %s17, 3
    %p119 = por %p117, %p118
    %p121 = scmp.ne.s32.totalorder %s106, %s120
    %p122 = scmp.eq.s32.totalorder %s17, 0
    %p123 = por %p121, %p122
    %s125 = sadd.s32 %s124, 1
    %p128 = scmp.eq.s32.totalorder %s11, 3
    %p129 = scmp.ne.s32.totalorder %s124, %s126
    %p130 = scmp.eq.s32.totalorder %s11, 0
    %p131 = por %p129, %p130
    %p132 = scmp.ne.s32.totalorder %s124, %s126
    %p133 = scmp.eq.s32.totalorder %s16, 3
    %p134 = por %p132, %p133
    %p135 = scmp.ne.s32.totalorder %s126, %s127
    %p136 = scmp.eq.s32.totalorder %s16, 0
    %p137 = por %p135, %p136
    %p138 = scmp.ne.s32.totalorder %s126, %s127
    %p139 = scmp.eq.s32.totalorder %s17, 3
    %p140 = por %p138, %p139
    %p142 = scmp.ne.s32.totalorder %s127, %s141
    %p143 = scmp.eq.s32.totalorder %s17, 0
    %p144 = por %p142, %p143
    %s145 = ssub.s32 %s18, %s30
    %s146 = ssub.s32 %s19, %s26
    %s147 = sor.u32 %s145, %s146
    %p148 = scmp.eq.s32.totalorder %s147, 0
    %s150 = sadd.s32 %s149, 1
    %s151 = scalar_select %p148, %s149, %s150
    %p154 = pneg %p148
    %p155 = scmp.eq.s32.totalorder %s11, 3
    %p156 = por %p154, %p155
    %p157 = scmp.ne.s32.totalorder %s149, %s152
    %p158 = scmp.eq.s32.totalorder %s11, 0
    %p159 = por %p157, %p158
    %p160 = scmp.ne.s32.totalorder %s149, %s152
    %p161 = scmp.eq.s32.totalorder %s16, 3
    %p162 = por %p160, %p161
    %p163 = scmp.ne.s32.totalorder %s152, %s153
    %p164 = scmp.eq.s32.totalorder %s16, 0
    %p165 = por %p163, %p164
    %p166 = scmp.ne.s32.totalorder %s152, %s153
    %p167 = scmp.eq.s32.totalorder %s17, 3
    %p168 = por %p166, %p167
    %p170 = scmp.ne.s32.totalorder %s153, %s169
    %p171 = scmp.eq.s32.totalorder %s17, 0
    %p172 = por %p170, %p171
    %p173 = scmp.le.s32.totalorder 1, %s11
    %p174 = scmp.lt.s32.totalorder %s11, 5
    %p175 = pnand %p173, %p174
    %p176 = pneg %p175
    // Predicated region
    $region9: #{up_forward.3} parent=5 // pred_check
      _
    $region10: #{up_forward.3} parent=5 // pred_check_branch
      %178 = sbr.rel (%p175) target = $region12
    $region11: #{up_forward.3} parent=5 // pred_region
      %s179 = ssub.s32 %s11, 1
      // Predicated region
      $region13: #{up_forward.3} parent=11 // pred_check
        %p180 = pneg %p74
      $region14: #{up_forward.3} parent=11 // pred_check_branch
        %182 = sbr.rel (%p180) target = $region16
      $region15: #{up_forward.3} parent=11 // pred_region
        _
      $region16: #{up_forward.3} parent=11 // pred_fallthru
        _
      // Predicated region
      $region17: #{up_forward.3} parent=11 // pred_check
        %p183 = pneg %p95
      $region18: #{up_forward.3} parent=11 // pred_check_branch
        %185 = sbr.rel (%p183) target = $region20
      $region19: #{up_forward.3} parent=11 // pred_region
        _
      $region20: #{up_forward.3} parent=11 // pred_fallthru
        _
      // Predicated region
      $region21: #{up_forward.3} parent=11 // pred_check
        %p186 = pneg %p116
      $region22: #{up_forward.3} parent=11 // pred_check_branch
        %188 = sbr.rel (%p186) target = $region24
      $region23: #{up_forward.3} parent=11 // pred_region
        _
      $region24: #{up_forward.3} parent=11 // pred_fallthru
        _
      // Predicated region
      $region25: #{up_forward.3} parent=11 // pred_check
        %p189 = pneg %p137
      $region26: #{up_forward.3} parent=11 // pred_check_branch
        %191 = sbr.rel (%p189) target = $region28
      $region27: #{up_forward.3} parent=11 // pred_region
        _
      $region28: #{up_forward.3} parent=11 // pred_fallthru
        _
    $region12: #{up_forward.3} parent=5 // pred_fallthru
      _
    %p192 = scmp.lt.s32.totalorder %s11, 4
    // Predicated region
    $region29: #{up_forward.3} parent=5 // pred_check
      %p193 = pneg %p192
    $region30: #{up_forward.3} parent=5 // pred_check_branch
      %195 = sbr.rel (%p193) target = $region32
    $region31: #{up_forward.3} parent=5 // pred_region
      // Predicated region
      $region33: #{up_forward.3} parent=31 // pred_check
        %p196 = pneg %p47
      $region34: #{up_forward.3} parent=31 // pred_check_branch
        %198 = sbr.rel (%p196) target = $region36
      $region35: #{up_forward.3} parent=31 // pred_region
        %s199 = smul.u32 %s18, 2
        %s200 = sadd.s32 %s199, %s19
        %p201 = scmp.lt.s32.totalorder %s200, 3
        %s202 = scalar_select %p201, %s200, 3
        %s203 = smul.addr %s202, 2
        %s204 = smul.addr %s203, 2
        %s205 = scalar_lea.vmem %s0, %s204
        %s206 = smul.u32 %s18, 2
        %s207 = sadd.s32 %s206, %s19
      $region36: #{up_forward.3} parent=31 // pred_fallthru
        _
    $region32: #{up_forward.3} parent=5 // pred_fallthru
      _
    %p208 = scmp.le.s32.totalorder 1, %s11
    %p209 = scmp.lt.s32.totalorder %s11, 5
    %p210 = pnand %p208, %p209
    %p211 = pneg %p210
    // Predicated region
    $region37: #{up_forward.3} parent=5 // pred_check
      _
    $region38: #{up_forward.3} parent=5 // pred_check_branch
      %213 = sbr.rel (%p210) target = $region40
    $region39: #{up_forward.3} parent=5 // pred_region
      %s214 = ssub.s32 %s11, 1
      %s215 = smul.u32 %s20, 2
      %s216 = sadd.s32 %s215, %s21
      %p217 = scmp.lt.s32.totalorder %s216, 3
      %s218 = scalar_select %p217, %s216, 3
      %s219 = smul.addr %s218, 2
      %s220 = smul.addr %s219, 2
      %s221 = scalar_lea.vmem %s0, %s220
      %p222 = pneg %p53
      %p223 = pneg %p50
      %p224 = pneg %p74
      %p225 = pneg %p71
      %p226 = pneg %p95
      %p227 = pneg %p92
      %p228 = pneg %p116
      %p229 = pneg %p113
      %p230 = pneg %p137
      %p231 = pneg %p134
      %p232 = pneg %p165
      %p233 = pneg %p162
      %p234 = scmp.lt.s32.totalorder %s20, 1
      %s235 = scalar_select %p234, %s20, 1
      %p236 = scmp.lt.s32.totalorder %s21, 1
      %s237 = scalar_select %p236, %s21, 1
      %s238 = smul.addr %s235, 2
      %s239 = sadd.s32 %s237, %s238
      %s240 = smul.addr %s239, 4
      %s241 = scalar_lea.vmem %s5, %s240
      %s242 = smul.u32 %s20, 2
      %s243 = sadd.s32 %s242, %s21
      %p244 = scmp.lt.s32.totalorder %s243, 3
      %s245 = scalar_select %p244, %s243, 3
      %s246 = smul.addr %s245, 2
      %s247 = smul.addr %s246, 2
      %s248 = scalar_lea.vmem %s0, %s247
      %s249 = smul.u32 %s20, 2
      %s250 = sadd.s32 %s249, %s21
      %p251 = scmp.lt.s32.totalorder %s20, 1
      %s252 = scalar_select %p251, %s20, 1
      %p253 = scmp.lt.s32.totalorder %s21, 1
      %s254 = scalar_select %p253, %s21, 1
      %s255 = smul.addr %s252, 2
      %s256 = sadd.s32 %s254, %s255
      %s257 = smul.addr %s256, 4
      %s258 = scalar_lea.vmem %s5, %s257
      %v260 = vld [vmem:[%s1] sm:$0x1]
      %v261 = vld [vmem:[%s2] sm:$0x1]
      %v262 = vld [vmem:[%s248] sm:$0x3]
      %v264 = vpack.i.b16 %v260, %v260
      %v266 = vlaneseq
      %v267 = vshrl.u32 %v266, 7
      %v268 = vsub.s32 0, %v267
      %v269 = vrot.slane %v264, %v268
      %v270 = vmul.bf16 %v262, %v269
      %v271 = vld [vmem:[%s3] sm:$0x3]
      %v272 = vld [vmem:[%s248] sm:$0xf]
      %s273 = scalar_lea.vmem %s3, 2
      %v274 = vld [vmem:[%s273] sm:$0x3]
      %v277 = vunpack.c.l.s4 1983009808
      %v278 = vunpack.c.0.s8 %v277
      %v279 = vlaneseq
      %v280 = vshrl.u32 %v279, 7
      %v281 = vsub.s32 %v278, %v280
      %v282 = vrot.slane %v272, %v281
      %v283 = vcombine.high %v282, %v282
      %284 = vrot.lane.b32.xlu0 %v282, 127
      %v285 = vpop.permute.xlu0 %284
      %286 = vrot.lane.b32.xlu0 %v283, 127
      %v287 = vpop.permute.xlu0 %286
      %vm288 = vcmask 1039360
      %v289 = vsel %vm288, %v285, %v287
      %vm290 = vcmask 31744
      %v292 = vsel %vm290, %v274, 0
      %vm294 = vcmask 1041408
      %v296 = vsel %vm294, %v289, 0
      %298 = vmatprep.subr.bf16.mxu0 0
      %299 = vmatpush1.bf16.msra.mxu0 %v296
      %300 = vmatprep.subr.bf16.mxu0 0
      %301 = vmatpush1.bf16.msra.mxu0 0
      %302 = vmatprep.subr.bf16.mxu0 0
      %303 = vmatpush1.bf16.msra.mxu0 0
      %304 = vmatprep.subr.bf16.mxu0 0
      %305 = vmatpush1.bf16.msra.mxu0 0
      %306 = vmatprep.subr.bf16.mxu0 0
      %307 = vmatpush1.bf16.msra.mxu0 0
      %308 = vmatprep.subr.bf16.mxu0 0
      %309 = vmatpush1.bf16.msra.mxu0 0
      %310 = vmatprep.subr.bf16.mxu0 0
      %311 = vmatpush1.bf16.msra.mxu0 0
      %312 = vmatprep.subr.bf16.mxu0 0
      %313 = vmatpush1.bf16.msra.mxu0 0
      %314 = vmatprep.subr.bf16.mxu0 0
      %315 = vmatpush1.bf16.msra.mxu0 0
      %316 = vmatprep.subr.bf16.mxu0 0
      %317 = vmatpush1.bf16.msra.mxu0 0
      %318 = vmatprep.subr.bf16.mxu0 0
      %319 = vmatpush1.bf16.msra.mxu0 0
      %320 = vmatprep.subr.bf16.mxu0 0
      %321 = vmatpush1.bf16.msra.mxu0 0
      %322 = vmatprep.subr.bf16.mxu0 0
      %323 = vmatpush1.bf16.msra.mxu0 0
      %324 = vmatprep.subr.bf16.mxu0 0
      %325 = vmatpush1.bf16.msra.mxu0 0
      %326 = vmatprep.subr.bf16.mxu0 0
      %327 = vmatpush1.bf16.msra.mxu0 0
      %328 = vmatprep.subr.bf16.mxu0 0
      %329 = vmatpush1.bf16.msra.mxu0 0
      %330 = vmatprep.mubr.bf16.mxu0 0
      %331 = vmatmul.mubr.bf16.gmra.mrb[0].mxu0 %v292
      %v332 = vpop.f32.mrb[0].mxu0
      %v333 = vadd.f32 0.0, %v332
      %v334 = vpop.f32.mrb[0].mxu0
      %v335 = vpop.f32.mrb[0].mxu0
      %v336 = vpop.f32.mrb[0].mxu0
      %337 = vdwg.mxu0
      %v339 = vsel %vm290, %v271, 0
      %v342 = vsel %vm294, %v270, 0
      %344 = vmatprep.subr.bf16.mxu0 0
      %345 = vmatpush1.bf16.msra.mxu0 %v342
      %346 = vmatprep.subr.bf16.mxu0 0
      %347 = vmatpush1.bf16.msra.mxu0 0
      %348 = vmatprep.subr.bf16.mxu0 0
      %349 = vmatpush1.bf16.msra.mxu0 0
      %350 = vmatprep.subr.bf16.mxu0 0
      %351 = vmatpush1.bf16.msra.mxu0 0
      %352 = vmatprep.subr.bf16.mxu0 0
      %353 = vmatpush1.bf16.msra.mxu0 0
      %354 = vmatprep.subr.bf16.mxu0 0
      %355 = vmatpush1.bf16.msra.mxu0 0
      %356 = vmatprep.subr.bf16.mxu0 0
      %357 = vmatpush1.bf16.msra.mxu0 0
      %358 = vmatprep.subr.bf16.mxu0 0
      %359 = vmatpush1.bf16.msra.mxu0 0
      %360 = vmatprep.subr.bf16.mxu0 0
      %361 = vmatpush1.bf16.msra.mxu0 0
      %362 = vmatprep.subr.bf16.mxu0 0
      %363 = vmatpush1.bf16.msra.mxu0 0
      %364 = vmatprep.subr.bf16.mxu0 0
      %365 = vmatpush1.bf16.msra.mxu0 0
      %366 = vmatprep.subr.bf16.mxu0 0
      %367 = vmatpush1.bf16.msra.mxu0 0
      %368 = vmatprep.subr.bf16.mxu0 0
      %369 = vmatpush1.bf16.msra.mxu0 0
      %370 = vmatprep.subr.bf16.mxu0 0
      %371 = vmatpush1.bf16.msra.mxu0 0
      %372 = vmatprep.subr.bf16.mxu0 0
      %373 = vmatpush1.bf16.msra.mxu0 0
      %374 = vmatprep.subr.bf16.mxu0 0
      %375 = vmatpush1.bf16.msra.mxu0 0
      %376 = vmatprep.mubr.bf16.mxu0 0
      %377 = vmatmul.mubr.bf16.gmra.mrb[0].mxu0 %v339
      %v378 = vpop.f32.mrb[0].mxu0
      %v379 = vadd.f32 %v333, %v378
      %v380 = vpop.f32.mrb[0].mxu0
      %v381 = vpop.f32.mrb[0].mxu0
      %v382 = vpop.f32.mrb[0].mxu0
      %383 = vdwg.mxu0
      %v384 = vld [vmem:[%s248] sm:$0xf]
      %v386 = vpack.i.b16 %v261, %v261
      %v388 = vlaneseq
      %v389 = vshrl.u32 %v388, 7
      %v390 = vsub.s32 0, %v389
      %v391 = vrot.slane %v386, %v390
      %v394 = vunpack.c.l.s4 1983009808
      %v395 = vunpack.c.0.s8 %v394
      %v396 = vlaneseq
      %v397 = vshrl.u32 %v396, 7
      %v398 = vsub.s32 %v395, %v397
      %v399 = vrot.slane %v391, %v398
      %400 = vrot.lane.b32.xlu0 %v399, 2
      %v401 = vpop.permute.xlu0 %400
      %v402 = vrot.slane %v401, 6
      %vm403 = vcmask 15360
      %v404 = vsel %vm403, %v402, %v401
      %v406 = vmul.bf16 %v384, %v404
      %s407 = scalar_lea.vmem %s3, 4
      %v408 = vld [vmem:[%s407] sm:$0x3]
      %v411 = vunpack.c.l.s4 1983009808
      %v412 = vunpack.c.0.s8 %v411
      %v413 = vlaneseq
      %v414 = vshrl.u32 %v413, 7
      %v415 = vsub.s32 %v412, %v414
      %v416 = vrot.slane %v406, %v415
      %v417 = vcombine.high %v416, %v416
      %418 = vrot.lane.b32.xlu0 %v416, 126
      %v419 = vpop.permute.xlu0 %418
      %420 = vrot.lane.b32.xlu0 %v417, 126
      %v421 = vpop.permute.xlu0 %420
      %vm422 = vcmask 1031168
      %v423 = vsel %vm422, %v419, %v421
      %v425 = vsel %vm290, %v408, 0
      %v428 = vsel %vm294, %v423, 0
      %430 = vmatprep.subr.bf16.mxu0 0
      %431 = vmatpush1.bf16.msra.mxu0 %v428
      %432 = vmatprep.subr.bf16.mxu0 0
      %433 = vmatpush1.bf16.msra.mxu0 0
      %434 = vmatprep.subr.bf16.mxu0 0
      %435 = vmatpush1.bf16.msra.mxu0 0
      %436 = vmatprep.subr.bf16.mxu0 0
      %437 = vmatpush1.bf16.msra.mxu0 0
      %438 = vmatprep.subr.bf16.mxu0 0
      %439 = vmatpush1.bf16.msra.mxu0 0
      %440 = vmatprep.subr.bf16.mxu0 0
      %441 = vmatpush1.bf16.msra.mxu0 0
      %442 = vmatprep.subr.bf16.mxu0 0
      %443 = vmatpush1.bf16.msra.mxu0 0
      %444 = vmatprep.subr.bf16.mxu0 0
      %445 = vmatpush1.bf16.msra.mxu0 0
      %446 = vmatprep.subr.bf16.mxu0 0
      %447 = vmatpush1.bf16.msra.mxu0 0
      %448 = vmatprep.subr.bf16.mxu0 0
      %449 = vmatpush1.bf16.msra.mxu0 0
      %450 = vmatprep.subr.bf16.mxu0 0
      %451 = vmatpush1.bf16.msra.mxu0 0
      %452 = vmatprep.subr.bf16.mxu0 0
      %453 = vmatpush1.bf16.msra.mxu0 0
      %454 = vmatprep.subr.bf16.mxu0 0
      %455 = vmatpush1.bf16.msra.mxu0 0
      %456 = vmatprep.subr.bf16.mxu0 0
      %457 = vmatpush1.bf16.msra.mxu0 0
      %458 = vmatprep.subr.bf16.mxu0 0
      %459 = vmatpush1.bf16.msra.mxu0 0
      %460 = vmatprep.subr.bf16.mxu0 0
      %461 = vmatpush1.bf16.msra.mxu0 0
      %462 = vmatprep.mubr.bf16.mxu0 0
      %463 = vmatmul.mubr.bf16.gmra.mrb[0].mxu0 %v425
      %v464 = vpop.f32.mrb[0].mxu0
      %v465 = vadd.f32 0.0, %v464
      %v466 = vpop.f32.mrb[0].mxu0
      %v467 = vpop.f32.mrb[0].mxu0
      %v468 = vpop.f32.mrb[0].mxu0
      %469 = vdwg.mxu0
      %v470 = vadd.f32 %v379, %v465
      %v471 = vld [vmem:[%s248] sm:$0xf]
      %v474 = vunpack.c.l.s4 1983009808
      %v475 = vunpack.c.0.s8 %v474
      %v476 = vlaneseq
      %v477 = vshrl.u32 %v476, 7
      %v478 = vsub.s32 %v475, %v477
      %v479 = vrot.slane %v269, %v478
      %480 = vrot.lane.b32.xlu0 %v479, 16
      %v481 = vpop.permute.xlu0 %480
      %v482 = vrot.slane %v481, 6
      %vm483 = vcmask 130048
      %v484 = vsel %vm483, %v482, %v481
      %v486 = vmul.bf16 %v471, %v484
      %s487 = scalar_lea.vmem %s3, 6
      %v488 = vld [vmem:[%s487] sm:$0x3]
      %v491 = vunpack.c.l.s4 1983009808
      %v492 = vunpack.c.0.s8 %v491
      %v493 = vlaneseq
      %v494 = vshrl.u32 %v493, 7
      %v495 = vsub.s32 %v492, %v494
      %v496 = vrot.slane %v486, %v495
      %v497 = vcombine.high %v496, %v496
      %498 = vrot.lane.b32.xlu0 %v496, 112
      %v499 = vpop.permute.xlu0 %498
      %500 = vrot.lane.b32.xlu0 %v497, 112
      %v501 = vpop.permute.xlu0 %500
      %vm502 = vcmask 916480
      %v503 = vsel %vm502, %v499, %v501
      %v505 = vsel %vm290, %v488, 0
      %v508 = vsel %vm294, %v503, 0
      %510 = vmatprep.subr.bf16.mxu0 0
      %511 = vmatpush1.bf16.msra.mxu0 %v508
      %512 = vmatprep.subr.bf16.mxu0 0
      %513 = vmatpush1.bf16.msra.mxu0 0
      %514 = vmatprep.subr.bf16.mxu0 0
      %515 = vmatpush1.bf16.msra.mxu0 0
      %516 = vmatprep.subr.bf16.mxu0 0
      %517 = vmatpush1.bf16.msra.mxu0 0
      %518 = vmatprep.subr.bf16.mxu0 0
      %519 = vmatpush1.bf16.msra.mxu0 0
      %520 = vmatprep.subr.bf16.mxu0 0
      %521 = vmatpush1.bf16.msra.mxu0 0
      %522 = vmatprep.subr.bf16.mxu0 0
      %523 = vmatpush1.bf16.msra.mxu0 0
      %524 = vmatprep.subr.bf16.mxu0 0
      %525 = vmatpush1.bf16.msra.mxu0 0
      %526 = vmatprep.subr.bf16.mxu0 0
      %527 = vmatpush1.bf16.msra.mxu0 0
      %528 = vmatprep.subr.bf16.mxu0 0
      %529 = vmatpush1.bf16.msra.mxu0 0
      %530 = vmatprep.subr.bf16.mxu0 0
      %531 = vmatpush1.bf16.msra.mxu0 0
      %532 = vmatprep.subr.bf16.mxu0 0
      %533 = vmatpush1.bf16.msra.mxu0 0
      %534 = vmatprep.subr.bf16.mxu0 0
      %535 = vmatpush1.bf16.msra.mxu0 0
      %536 = vmatprep.subr.bf16.mxu0 0
      %537 = vmatpush1.bf16.msra.mxu0 0
      %538 = vmatprep.subr.bf16.mxu0 0
      %539 = vmatpush1.bf16.msra.mxu0 0
      %540 = vmatprep.subr.bf16.mxu0 0
      %541 = vmatpush1.bf16.msra.mxu0 0
      %542 = vmatprep.mubr.bf16.mxu0 0
      %543 = vmatmul.mubr.bf16.gmra.mrb[0].mxu0 %v505
      %v544 = vpop.f32.mrb[0].mxu0
      %v545 = vadd.f32 0.0, %v544
      %v546 = vpop.f32.mrb[0].mxu0
      %v547 = vpop.f32.mrb[0].mxu0
      %v548 = vpop.f32.mrb[0].mxu0
      %549 = vdwg.mxu0
      %v550 = vadd.f32 %v470, %v545
      %v551 = vld [vmem:[%s248] sm:$0xf]
      %s552 = scalar_lea.vmem %s3, 8
      %v553 = vld [vmem:[%s552] sm:$0x3]
      %v556 = vunpack.c.l.s4 1983009808
      %v557 = vunpack.c.0.s8 %v556
      %v558 = vlaneseq
      %v559 = vshrl.u32 %v558, 7
      %v560 = vsub.s32 %v557, %v559
      %v561 = vrot.slane %v551, %v560
      %v562 = vcombine.high %v561, %v561
      %563 = vrot.lane.b32.xlu0 %v561, 111
      %v564 = vpop.permute.xlu0 %563
      %565 = vrot.lane.b32.xlu0 %v562, 111
      %v566 = vpop.permute.xlu0 %565
      %vm567 = vcmask 908288
      %v568 = vsel %vm567, %v564, %v566
      %v570 = vsel %vm290, %v553, 0
      %v573 = vsel %vm294, %v568, 0
      %575 = vmatprep.subr.bf16.mxu0 0
      %576 = vmatpush1.bf16.msra.mxu0 %v573
      %577 = vmatprep.subr.bf16.mxu0 0
      %578 = vmatpush1.bf16.msra.mxu0 0
      %579 = vmatprep.subr.bf16.mxu0 0
      %580 = vmatpush1.bf16.msra.mxu0 0
      %581 = vmatprep.subr.bf16.mxu0 0
      %582 = vmatpush1.bf16.msra.mxu0 0
      %583 = vmatprep.subr.bf16.mxu0 0
      %584 = vmatpush1.bf16.msra.mxu0 0
      %585 = vmatprep.subr.bf16.mxu0 0
      %586 = vmatpush1.bf16.msra.mxu0 0
      %587 = vmatprep.subr.bf16.mxu0 0
      %588 = vmatpush1.bf16.msra.mxu0 0
      %589 = vmatprep.subr.bf16.mxu0 0
      %590 = vmatpush1.bf16.msra.mxu0 0
      %591 = vmatprep.subr.bf16.mxu0 0
      %592 = vmatpush1.bf16.msra.mxu0 0
      %593 = vmatprep.subr.bf16.mxu0 0
      %594 = vmatpush1.bf16.msra.mxu0 0
      %595 = vmatprep.subr.bf16.mxu0 0
      %596 = vmatpush1.bf16.msra.mxu0 0
      %597 = vmatprep.subr.bf16.mxu0 0
      %598 = vmatpush1.bf16.msra.mxu0 0
      %599 = vmatprep.subr.bf16.mxu0 0
      %600 = vmatpush1.bf16.msra.mxu0 0
      %601 = vmatprep.subr.bf16.mxu0 0
      %602 = vmatpush1.bf16.msra.mxu0 0
      %603 = vmatprep.subr.bf16.mxu0 0
      %604 = vmatpush1.bf16.msra.mxu0 0
      %605 = vmatprep.subr.bf16.mxu0 0
      %606 = vmatpush1.bf16.msra.mxu0 0
      %607 = vmatprep.mubr.bf16.mxu0 0
      %608 = vmatmul.mubr.bf16.gmra.mrb[0].mxu0 %v570
      %v609 = vpop.f32.mrb[0].mxu0
      %v610 = vadd.f32 0.0, %v609
      %v611 = vpop.f32.mrb[0].mxu0
      %v612 = vpop.f32.mrb[0].mxu0
      %v613 = vpop.f32.mrb[0].mxu0
      %614 = vdwg.mxu0
      %v615 = vadd.f32 %v550, %v610
      %v616 = vld [vmem:[%s248] sm:$0xf]
      %617 = vrot.lane.b32.xlu0 %v399, 18
      %v618 = vpop.permute.xlu0 %617
      %v619 = vrot.slane %v618, 6
      %vm620 = vcmask 146432
      %v621 = vsel %vm620, %v619, %v618
      %v623 = vmul.bf16 %v616, %v621
      %s624 = scalar_lea.vmem %s3, 10
      %v625 = vld [vmem:[%s624] sm:$0x3]
      %v628 = vunpack.c.l.s4 1983009808
      %v629 = vunpack.c.0.s8 %v628
      %v630 = vlaneseq
      %v631 = vshrl.u32 %v630, 7
      %v632 = vsub.s32 %v629, %v631
      %v633 = vrot.slane %v623, %v632
      %v634 = vcombine.high %v633, %v633
      %635 = vrot.lane.b32.xlu0 %v633, 110
      %v636 = vpop.permute.xlu0 %635
      %637 = vrot.lane.b32.xlu0 %v634, 110
      %v638 = vpop.permute.xlu0 %637
      %vm639 = vcmask 900096
      %v640 = vsel %vm639, %v636, %v638
      %v642 = vsel %vm290, %v625, 0
      %v645 = vsel %vm294, %v640, 0
      %647 = vmatprep.subr.bf16.mxu0 0
      %648 = vmatpush1.bf16.msra.mxu0 %v645
      %649 = vmatprep.subr.bf16.mxu0 0
      %650 = vmatpush1.bf16.msra.mxu0 0
      %651 = vmatprep.subr.bf16.mxu0 0
      %652 = vmatpush1.bf16.msra.mxu0 0
      %653 = vmatprep.subr.bf16.mxu0 0
      %654 = vmatpush1.bf16.msra.mxu0 0
      %655 = vmatprep.subr.bf16.mxu0 0
      %656 = vmatpush1.bf16.msra.mxu0 0
      %657 = vmatprep.subr.bf16.mxu0 0
      %658 = vmatpush1.bf16.msra.mxu0 0
      %659 = vmatprep.subr.bf16.mxu0 0
      %660 = vmatpush1.bf16.msra.mxu0 0
      %661 = vmatprep.subr.bf16.mxu0 0
      %662 = vmatpush1.bf16.msra.mxu0 0
      %663 = vmatprep.subr.bf16.mxu0 0
      %664 = vmatpush1.bf16.msra.mxu0 0
      %665 = vmatprep.subr.bf16.mxu0 0
      %666 = vmatpush1.bf16.msra.mxu0 0
      %667 = vmatprep.subr.bf16.mxu0 0
      %668 = vmatpush1.bf16.msra.mxu0 0
      %669 = vmatprep.subr.bf16.mxu0 0
      %670 = vmatpush1.bf16.msra.mxu0 0
      %671 = vmatprep.subr.bf16.mxu0 0
      %672 = vmatpush1.bf16.msra.mxu0 0
      %673 = vmatprep.subr.bf16.mxu0 0
      %674 = vmatpush1.bf16.msra.mxu0 0
      %675 = vmatprep.subr.bf16.mxu0 0
      %676 = vmatpush1.bf16.msra.mxu0 0
      %677 = vmatprep.subr.bf16.mxu0 0
      %678 = vmatpush1.bf16.msra.mxu0 0
      %679 = vmatprep.mubr.bf16.mxu0 0
      %680 = vmatmul.mubr.bf16.gmra.mrb[0].mxu0 %v642
      %v681 = vpop.f32.mrb[0].mxu0
      %v682 = vadd.f32 0.0, %v681
      %v683 = vpop.f32.mrb[0].mxu0
      %v684 = vpop.f32.mrb[0].mxu0
      %v685 = vpop.f32.mrb[0].mxu0
      %686 = vdwg.mxu0
      %v687 = vadd.f32 %v615, %v682
      %v688 = vld [vmem:[%s248] sm:$0xf]
      %689 = vrot.lane.b32.xlu0 %v479, 32
      %v690 = vpop.permute.xlu0 %689
      %v691 = vrot.slane %v690, 6
      %vm692 = vcmask 261120
      %v693 = vsel %vm692, %v691, %v690
      %v695 = vmul.bf16 %v688, %v693
      %s696 = scalar_lea.vmem %s3, 12
      %v697 = vld [vmem:[%s696] sm:$0x3]
      %v700 = vunpack.c.l.s4 1983009808
      %v701 = vunpack.c.0.s8 %v700
      %v702 = vlaneseq
      %v703 = vshrl.u32 %v702, 7
      %v704 = vsub.s32 %v701, %v703
      %v705 = vrot.slane %v695, %v704
      %v706 = vcombine.high %v705, %v705
      %707 = vrot.lane.b32.xlu0 %v705, 96
      %v708 = vpop.permute.xlu0 %707
      %709 = vrot.lane.b32.xlu0 %v706, 96
      %v710 = vpop.permute.xlu0 %709
      %vm711 = vcmask 785408
      %v712 = vsel %vm711, %v708, %v710
      %v714 = vsel %vm290, %v697, 0
      %v717 = vsel %vm294, %v712, 0
      %719 = vmatprep.subr.bf16.mxu0 0
      %720 = vmatpush1.bf16.msra.mxu0 %v717
      %721 = vmatprep.subr.bf16.mxu0 0
      %722 = vmatpush1.bf16.msra.mxu0 0
      %723 = vmatprep.subr.bf16.mxu0 0
      %724 = vmatpush1.bf16.msra.mxu0 0
      %725 = vmatprep.subr.bf16.mxu0 0
      %726 = vmatpush1.bf16.msra.mxu0 0
      %727 = vmatprep.subr.bf16.mxu0 0
      %728 = vmatpush1.bf16.msra.mxu0 0
      %729 = vmatprep.subr.bf16.mxu0 0
      %730 = vmatpush1.bf16.msra.mxu0 0
      %731 = vmatprep.subr.bf16.mxu0 0
      %732 = vmatpush1.bf16.msra.mxu0 0
      %733 = vmatprep.subr.bf16.mxu0 0
      %734 = vmatpush1.bf16.msra.mxu0 0
      %735 = vmatprep.subr.bf16.mxu0 0
      %736 = vmatpush1.bf16.msra.mxu0 0
      %737 = vmatprep.subr.bf16.mxu0 0
      %738 = vmatpush1.bf16.msra.mxu0 0
      %739 = vmatprep.subr.bf16.mxu0 0
      %740 = vmatpush1.bf16.msra.mxu0 0
      %741 = vmatprep.subr.bf16.mxu0 0
      %742 = vmatpush1.bf16.msra.mxu0 0
      %743 = vmatprep.subr.bf16.mxu0 0
      %744 = vmatpush1.bf16.msra.mxu0 0
      %745 = vmatprep.subr.bf16.mxu0 0
      %746 = vmatpush1.bf16.msra.mxu0 0
      %747 = vmatprep.subr.bf16.mxu0 0
      %748 = vmatpush1.bf16.msra.mxu0 0
      %749 = vmatprep.subr.bf16.mxu0 0
      %750 = vmatpush1.bf16.msra.mxu0 0
      %751 = vmatprep.mubr.bf16.mxu0 0
      %752 = vmatmul.mubr.bf16.gmra.mrb[0].mxu0 %v714
      %v753 = vpop.f32.mrb[0].mxu0
      %v754 = vadd.f32 0.0, %v753
      %v755 = vpop.f32.mrb[0].mxu0
      %v756 = vpop.f32.mrb[0].mxu0
      %v757 = vpop.f32.mrb[0].mxu0
      %758 = vdwg.mxu0
      %v759 = vadd.f32 %v687, %v754
      %v760 = vld [vmem:[%s248] sm:$0xf]
      %s761 = scalar_lea.vmem %s3, 14
      %v762 = vld [vmem:[%s761] sm:$0x3]
      %v765 = vunpack.c.l.s4 1983009808
      %v766 = vunpack.c.0.s8 %v765
      %v767 = vlaneseq
      %v768 = vshrl.u32 %v767, 7
      %v769 = vsub.s32 %v766, %v768
      %v770 = vrot.slane %v760, %v769
      %v771 = vcombine.high %v770, %v770
      %772 = vrot.lane.b32.xlu0 %v770, 95
      %v773 = vpop.permute.xlu0 %772
      %774 = vrot.lane.b32.xlu0 %v771, 95
      %v775 = vpop.permute.xlu0 %774
      %vm776 = vcmask 777216
      %v777 = vsel %vm776, %v773, %v775
      %v779 = vsel %vm290, %v762, 0
      %v782 = vsel %vm294, %v777, 0
      %784 = vmatprep.subr.bf16.mxu0 0
      %785 = vmatpush1.bf16.msra.mxu0 %v782
      %786 = vmatprep.subr.bf16.mxu0 0
      %787 = vmatpush1.bf16.msra.mxu0 0
      %788 = vmatprep.subr.bf16.mxu0 0
      %789 = vmatpush1.bf16.msra.mxu0 0
      %790 = vmatprep.subr.bf16.mxu0 0
      %791 = vmatpush1.bf16.msra.mxu0 0
      %792 = vmatprep.subr.bf16.mxu0 0
      %793 = vmatpush1.bf16.msra.mxu0 0
      %794 = vmatprep.subr.bf16.mxu0 0
      %795 = vmatpush1.bf16.msra.mxu0 0
      %796 = vmatprep.subr.bf16.mxu0 0
      %797 = vmatpush1.bf16.msra.mxu0 0
      %798 = vmatprep.subr.bf16.mxu0 0
      %799 = vmatpush1.bf16.msra.mxu0 0
      %800 = vmatprep.subr.bf16.mxu0 0
      %801 = vmatpush1.bf16.msra.mxu0 0
      %802 = vmatprep.subr.bf16.mxu0 0
      %803 = vmatpush1.bf16.msra.mxu0 0
      %804 = vmatprep.subr.bf16.mxu0 0
      %805 = vmatpush1.bf16.msra.mxu0 0
      %806 = vmatprep.subr.bf16.mxu0 0
      %807 = vmatpush1.bf16.msra.mxu0 0
      %808 = vmatprep.subr.bf16.mxu0 0
      %809 = vmatpush1.bf16.msra.mxu0 0
      %810 = vmatprep.subr.bf16.mxu0 0
      %811 = vmatpush1.bf16.msra.mxu0 0
      %812 = vmatprep.subr.bf16.mxu0 0
      %813 = vmatpush1.bf16.msra.mxu0 0
      %814 = vmatprep.subr.bf16.mxu0 0
      %815 = vmatpush1.bf16.msra.mxu0 0
      %816 = vmatprep.mubr.bf16.mxu0 0
      %817 = vmatmul.mubr.bf16.gmra.mrb[0].mxu0 %v779
      %v818 = vpop.f32.mrb[0].mxu0
      %v819 = vadd.f32 0.0, %v818
      %v820 = vpop.f32.mrb[0].mxu0
      %v821 = vpop.f32.mrb[0].mxu0
      %v822 = vpop.f32.mrb[0].mxu0
      %823 = vdwg.mxu0
      %v824 = vadd.f32 %v759, %v819
      %v825 = vld [vmem:[%s248] sm:$0xf]
      %826 = vrot.lane.b32.xlu0 %v399, 34
      %v827 = vpop.permute.xlu0 %826
      %v828 = vrot.slane %v827, 6
      %vm829 = vcmask 277504
      %v830 = vsel %vm829, %v828, %v827
      %v832 = vmul.bf16 %v825, %v830
      %s833 = scalar_lea.vmem %s3, 16
      %v834 = vld [vmem:[%s833] sm:$0x3]
      %v837 = vunpack.c.l.s4 1983009808
      %v838 = vunpack.c.0.s8 %v837
      %v839 = vlaneseq
      %v840 = vshrl.u32 %v839, 7
      %v841 = vsub.s32 %v838, %v840
      %v842 = vrot.slane %v832, %v841
      %v843 = vcombine.high %v842, %v842
      %844 = vrot.lane.b32.xlu0 %v842, 94
      %v845 = vpop.permute.xlu0 %844
      %846 = vrot.lane.b32.xlu0 %v843, 94
      %v847 = vpop.permute.xlu0 %846
      %vm848 = vcmask 769024
      %v849 = vsel %vm848, %v845, %v847
      %v851 = vsel %vm290, %v834, 0
      %v854 = vsel %vm294, %v849, 0
      %856 = vmatprep.subr.bf16.mxu0 0
      %857 = vmatpush1.bf16.msra.mxu0 %v854
      %858 = vmatprep.subr.bf16.mxu0 0
      %859 = vmatpush1.bf16.msra.mxu0 0
      %860 = vmatprep.subr.bf16.mxu0 0
      %861 = vmatpush1.bf16.msra.mxu0 0
      %862 = vmatprep.subr.bf16.mxu0 0
      %863 = vmatpush1.bf16.msra.mxu0 0
      %864 = vmatprep.subr.bf16.mxu0 0
      %865 = vmatpush1.bf16.msra.mxu0 0
      %866 = vmatprep.subr.bf16.mxu0 0
      %867 = vmatpush1.bf16.msra.mxu0 0
      %868 = vmatprep.subr.bf16.mxu0 0
      %869 = vmatpush1.bf16.msra.mxu0 0
      %870 = vmatprep.subr.bf16.mxu0 0
      %871 = vmatpush1.bf16.msra.mxu0 0
      %872 = vmatprep.subr.bf16.mxu0 0
      %873 = vmatpush1.bf16.msra.mxu0 0
      %874 = vmatprep.subr.bf16.mxu0 0
      %875 = vmatpush1.bf16.msra.mxu0 0
      %876 = vmatprep.subr.bf16.mxu0 0
      %877 = vmatpush1.bf16.msra.mxu0 0
      %878 = vmatprep.subr.bf16.mxu0 0
      %879 = vmatpush1.bf16.msra.mxu0 0
      %880 = vmatprep.subr.bf16.mxu0 0
      %881 = vmatpush1.bf16.msra.mxu0 0
      %882 = vmatprep.subr.bf16.mxu0 0
      %883 = vmatpush1.bf16.msra.mxu0 0
      %884 = vmatprep.subr.bf16.mxu0 0
      %885 = vmatpush1.bf16.msra.mxu0 0
      %886 = vmatprep.subr.bf16.mxu0 0
      %887 = vmatpush1.bf16.msra.mxu0 0
      %888 = vmatprep.mubr.bf16.mxu0 0
      %889 = vmatmul.mubr.bf16.gmra.mrb[0].mxu0 %v851
      %v890 = vpop.f32.mrb[0].mxu0
      %v891 = vadd.f32 0.0, %v890
      %v892 = vpop.f32.mrb[0].mxu0
      %v893 = vpop.f32.mrb[0].mxu0
      %v894 = vpop.f32.mrb[0].mxu0
      %895 = vdwg.mxu0
      %v896 = vadd.f32 %v824, %v891
      %v897 = vld [vmem:[%s4] sm:$0xf]
      %899 = vset.pattern.permute.xlu0 0
      %900 = vperm.xlu0 %899, %v897
      %v901 = vpop.permute.xlu0 %900
      %v903 = vadd.f32 %v896, %v901
      %vm904 = vcmp.ge.f32.partialorder %v903, 0.0
      %v905 = vmul.f32 %v903, 0.01
      %v906 = vsel %vm904, %v903, %v905
      %907 = vst [vmem:[%s258] sm:$0xf] %v906
      %p908 = scmp.lt.s32.totalorder %s20, 1
      %s909 = scalar_select %p908, %s20, 1
      %p910 = scmp.lt.s32.totalorder %s21, 1
      %s911 = scalar_select %p910, %s21, 1
      %s912 = smul.addr %s909, 2
      %s913 = sadd.s32 %s911, %s912
      %s914 = smul.addr %s913, 4
      %s915 = scalar_lea.vmem %s5, %s914
      // Predicated region
      $region41: #{up_forward.3} parent=39 // pred_check
        %p916 = pneg %p162
      $region42: #{up_forward.3} parent=39 // pred_check_branch
        %918 = sbr.rel (%p916) target = $region44
      $region43: #{up_forward.3} parent=39 // pred_region
        _
      $region44: #{up_forward.3} parent=39 // pred_fallthru
        _
    $region40: #{up_forward.3} parent=5 // pred_fallthru
      _
    %p919 = scmp.le.s32.totalorder 2, %s11
    // Predicated region
    $region45: #{up_forward.3} parent=5 // pred_check
      %p920 = pneg %p919
    $region46: #{up_forward.3} parent=5 // pred_check_branch
      %922 = sbr.rel (%p920) target = $region48
    $region47: #{up_forward.3} parent=5 // pred_region
      %s923 = ssub.s32 %s11, 2
      // Predicated region
      $region49: #{up_forward.3} parent=47 // pred_check
        %p924 = pneg %p168
      $region50: #{up_forward.3} parent=47 // pred_check_branch
        %926 = sbr.rel (%p924) target = $region52
      $region51: #{up_forward.3} parent=47 // pred_region
        %p927 = scmp.lt.s32.totalorder %s22, 1
        %s928 = scalar_select %p927, %s22, 1
        %p929 = scmp.lt.s32.totalorder %s23, 1
        %s930 = scalar_select %p929, %s23, 1
        %s931 = smul.addr %s928, 2
        %s932 = sadd.s32 %s930, %s931
        %s933 = smul.addr %s932, 4
        %s934 = scalar_lea.vmem %s5, %s933
      $region52: #{up_forward.3} parent=47 // pred_fallthru
        _
    $region48: #{up_forward.3} parent=5 // pred_fallthru
      _
  $region6: #{up_forward.3} parent=0 // loop_footer
    %s15 = sadd.s32 1, %s11
  $region7: #{up_forward.3} parent=0 // loop_footer_branch
    %10 = sbr.rel target = $region3
  $region8: #{up_forward.3} parent=0 // loop_exit
    _

</llo_original>
